<compile_context>
chip_gen: v6e
topology: v6e:2x2x1
jax: 0.10.0
libtpu: 0.0.40
codegen_flags: <defaults>
</compile_context>

<pallas_src>
import numpy as np

import jax
import jax.numpy as jnp
from jax.experimental import pallas as pl
from jax.experimental.pallas import tpu as pltpu


# ---------------------------------------------------------------------------
# Batch-tile selection (multiple of 8, <= 128, aim for >= 2 grid steps on v7x)
# ---------------------------------------------------------------------------
def _choose_bt(n):
    np8 = max(8, ((n + 7) // 8) * 8)
    if np8 <= 8:
        return 8
    half = (((np8 + 1) // 2) + 7) // 8 * 8   # ~half the padded batch, rounded to 8
    return max(8, min(128, half))


# ---------------------------------------------------------------------------
# Fused forward kernel (one batch tile per grid step), specialized on BT
# ---------------------------------------------------------------------------
def _make_kernel(BT):
    def kernel(x1_ref, b1_ref, b2_ref, w1_ref, w2_ref,
               cb1_ref, cb2_ref, fb1_ref, fb2_ref, o_ref):
        f32 = jnp.float32

        # ---- conv1: ONE MXU matmul (height window + both pool parities baked
        # into the 512 columns of B1).  Rows = pos1(h1)*BT + n, h1 = pooled row.
        y1 = jnp.dot(x1_ref[...], b1_ref[...], preferred_element_type=f32)   # (12*BT, 512)

        # ---- 2x2 max-pool = max over the 4 (h-par, w-par) 128-lane groups,
        # then bias (hoisted past the pool) + ReLU.
        p1 = jnp.maximum(jnp.maximum(y1[:, 0:128], y1[:, 128:256]),
                         jnp.maximum(y1[:, 256:384], y1[:, 384:512]))
        a1 = jnp.maximum(p1 + cb1_ref[...], 0.0)                             # (12*BT, 128)

        # ---- conv2: lane-concat 6 contiguous, vreg-aligned height-window
        # slices of a1 (a1 row blocks are stored evens-then-odds so every
        # window slice is contiguous), then ONE matmul with K = 768.
        lhs2 = jnp.concatenate(
            [a1[s * BT:(s + 4) * BT, :] for s in (0, 6, 1, 7, 2, 8)], axis=1)  # (4*BT, 768)
        y2 = jnp.dot(lhs2, b2_ref[...], preferred_element_type=f32)          # (4*BT, 512)
        p2 = jnp.maximum(jnp.maximum(y2[:, 0:128], y2[:, 128:256]),
                         jnp.maximum(y2[:, 256:384], y2[:, 384:512]))
        a2 = jnp.maximum(p2 + cb2_ref[...], 0.0)                             # (4*BT, 128)

        # ---- fc1 (+ReLU): NCHW flatten folded into W1; lane-concat the 4 h2
        # row blocks -> one K=512 dot.
        af = jnp.concatenate([a2[h * BT:(h + 1) * BT, :] for h in range(4)],
                             axis=1)                                          # (BT, 512)
        hfc = jnp.maximum(
            jnp.dot(af, w1_ref[...], preferred_element_type=f32) + fb1_ref[...],
            0.0)                                                              # (BT, 128)

        # ---- fc2 + log_softmax (class mask baked into fb2 padding = -1e30)
        logits = jnp.dot(hfc, w2_ref[...], preferred_element_type=f32) + fb2_ref[...]
        m = jnp.max(logits, axis=-1, keepdims=True)
        s = logits - m
        lse = jnp.log(jnp.sum(jnp.exp(s), axis=-1, keepdims=True))
        o_ref[...] = (s - lse).astype(o_ref.dtype)                           # (BT, 128)

    return kernel


# ---------------------------------------------------------------------------
# One-time weight repacking (outside the hot path; host-side numpy)
# ---------------------------------------------------------------------------
def prepare_params(params):
    w1 = np.asarray(params['conv1_w'], np.float32)    # (5, 1, 5, 5)
    b1 = np.asarray(params['conv1_b'], np.float32)    # (5,)
    w2 = np.asarray(params['conv2_w'], np.float32)    # (10, 5, 5, 5)
    b2 = np.asarray(params['conv2_b'], np.float32)    # (10,)
    fw1 = np.asarray(params['fc1_w'], np.float32)     # (80, 160)
    fb1 = np.asarray(params['fc1_b'], np.float32)     # (80,)
    fw2 = np.asarray(params['fc2_w'], np.float32)     # (10, 80)
    fb2 = np.asarray(params['fc2_b'], np.float32)     # (10,)

    # conv1 banded matrix.  LHS lane = jj*28 + w (jj = height offset within the
    # 6-row pool window, w = input col).  Output col = ph*256 + pw*128 + oc*12 + owh
    # (ph/pw = pool parities, owh = pooled output col 0..11).
    B1 = np.zeros((6 * 28, 512), np.float32)
    for oc in range(5):
        for ph in range(2):
            for pw in range(2):
                for owh in range(12):
                    ow = 2 * owh + pw
                    col = ph * 256 + pw * 128 + oc * 12 + owh
                    for ky in range(5):
                        jj = ph + ky
                        for kx in range(5):
                            B1[jj * 28 + (ow + kx), col] = w1[oc, 0, ky, kx]
    cb1 = np.zeros((1, 128), np.float32)
    for oc in range(5):
        cb1[0, oc * 12:(oc + 1) * 12] = b1[oc]

    # conv2 banded matrix.  LHS lane = jj*128 + ic*12 + w1l (a1 lane layout),
    # output col = ph*256 + pw*128 + oc*4 + owh (owh = pooled output col 0..3).
    B2 = np.zeros((6 * 128, 512), np.float32)
    for oc in range(10):
        for ic in range(5):
            for ph in range(2):
                for pw in range(2):
                    for owh in range(4):
                        ow = 2 * owh + pw
                        col = ph * 256 + pw * 128 + oc * 4 + owh
                        for ky in range(5):
                            jj = ph + ky
                            for kx in range(5):
                                B2[jj * 128 + ic * 12 + (ow + kx), col] = w2[oc, ic, ky, kx]
    cb2 = np.zeros((1, 128), np.float32)
    for oc in range(10):
        cb2[0, oc * 4:(oc + 1) * 4] = b2[oc]

    # fc1: PyTorch NCHW flatten f = oc*16 + h2*4 + w2 folded into the rows;
    # fc1 LHS lane = h2*128 + oc*4 + w2.
    W1 = np.zeros((512, 128), np.float32)
    for f_out in range(80):
        for oc in range(10):
            for h2 in range(4):
                for w2i in range(4):
                    W1[h2 * 128 + oc * 4 + w2i, f_out] = fw1[f_out, oc * 16 + h2 * 4 + w2i]
    fcb1 = np.zeros((1, 128), np.float32)
    fcb1[0, :80] = fb1

    # fc2: rows 0..79 real, cols 0..9 real; the 10-class softmax mask is baked
    # into the bias padding with a large FINITE negative (avoids inf - inf).
    W2 = np.zeros((128, 128), np.float32)
    W2[:80, :10] = fw2.T
    fcb2 = np.full((1, 128), -1e30, np.float32)
    fcb2[0, :10] = fb2

    return tuple(jnp.asarray(a) for a in (B1, B2, W1, W2, cb1, cb2, fcb1, fcb2))


# ---------------------------------------------------------------------------
# Forward wrapper
# ---------------------------------------------------------------------------
def testnet_forward(x_nchw, prepared):
    B1, B2, W1, W2, cb1, cb2, fcb1, fcb2 = prepared
    N = x_nchw.shape[0]
    BT = _choose_bt(N)
    T = -(-N // BT)
    NP = T * BT

    x = x_nchw.astype(jnp.float32).reshape(N, 28, 28)
    if NP != N:
        x = jnp.pad(x, ((0, NP - N), (0, 0), (0, 0)))
    x = x.reshape(T, BT, 28, 28)

    # Build the conv1 LHS (wrapper-side XLA gather, once per forward):
    #   row  = pos1(h1)*BT + n   with pooled rows stored evens-then-odds
    #   lane = jj*28 + w         (6-row height window covering both parities)
    order = np.concatenate([np.arange(0, 12, 2), np.arange(1, 12, 2)])      # pos -> h1
    h_idx = 2 * order[:, None] + np.arange(6)[None, :]                      # (12, 6)
    xw = x[:, :, jnp.asarray(h_idx), :]                                     # (T, BT, 12, 6, 28)
    x1 = xw.transpose(0, 2, 1, 3, 4).reshape(T * 12 * BT, 6 * 28)           # (T*12*BT, 168)

    out = pl.pallas_call(
        _make_kernel(BT),
        out_shape=jax.ShapeDtypeStruct((T * BT, 128), jnp.float32),
        grid=(T,),
        in_specs=[
            pl.BlockSpec((12 * BT, 168), lambda t: (t, 0)),     # conv1 LHS tile
            pl.BlockSpec((168, 512), lambda t: (0, 0)),         # conv1 banded weights
            pl.BlockSpec((768, 512), lambda t: (0, 0)),         # conv2 banded weights
            pl.BlockSpec((512, 128), lambda t: (0, 0)),         # fc1 weights (flatten folded in)
            pl.BlockSpec((128, 128), lambda t: (0, 0)),         # fc2 weights
            pl.BlockSpec((1, 128), lambda t: (0, 0)),           # conv1 bias (pooled layout)
            pl.BlockSpec((1, 128), lambda t: (0, 0)),           # conv2 bias (pooled layout)
            pl.BlockSpec((1, 128), lambda t: (0, 0)),           # fc1 bias (padded)
            pl.BlockSpec((1, 128), lambda t: (0, 0)),           # fc2 bias (+ class mask)
        ],
        out_specs=pl.BlockSpec((BT, 128), lambda t: (t, 0)),
        compiler_params=pltpu.CompilerParams(
            dimension_semantics=("parallel",),
            vmem_limit_bytes=32 * 1024 * 1024,   # footprint ~14 MiB at BT=128; v7x-safe
        ),
    )(x1, B1, B2, W1, W2, cb1, cb2, fcb1, fcb2)

    return out[:N, :10]


# ---------------------------------------------------------------------------
# Pure-JAX reference (for correctness check only)
# ---------------------------------------------------------------------------
def _reference_forward(x_nchw, params):
    hp = jax.lax.Precision.HIGHEST
    x = x_nchw.astype(jnp.float32)

    def conv(v, w, b):
        out = jax.lax.conv_general_dilated(
            v, w.astype(jnp.float32), (1, 1), 'VALID',
            dimension_numbers=('NCHW', 'OIHW', 'NCHW'), precision=hp)
        return out + b[None, :, None, None]

    def pool2(v):
        return jax.lax.reduce_window(v, -jnp.inf, jax.lax.max,
                                     (1, 1, 2, 2), (1, 1, 2, 2), 'VALID')

    x = jnp.maximum(pool2(conv(x, params['conv1_w'], params['conv1_b'])), 0.0)
    x = jnp.maximum(pool2(conv(x, params['conv2_w'], params['conv2_b'])), 0.0)
    x = x.reshape(x.shape[0], -1)
    x = jnp.maximum(jnp.dot(x, params['fc1_w'].T, precision=hp) + params['fc1_b'], 0.0)
    x = jnp.dot(x, params['fc2_w'].T, precision=hp) + params['fc2_b']
    return jax.nn.log_softmax(x, axis=-1)


# ---------------------------------------------------------------------------
# Deterministic parameter initialization (PyTorch-style uniform bounds)
# ---------------------------------------------------------------------------
def init_params(key):
    keys = jax.random.split(key, 8)

    def u(k, shape, fan_in):
        bound = 1.0 / (fan_in ** 0.5)
        return jax.random.uniform(k, shape, jnp.float32, -bound, bound)

    return {
        'conv1_w': u(keys[0], (5, 1, 5, 5), 1 * 5 * 5),
        'conv1_b': u(keys[1], (5,), 1 * 5 * 5),
        'conv2_w': u(keys[2], (10, 5, 5, 5), 5 * 5 * 5),
        'conv2_b': u(keys[3], (10,), 5 * 5 * 5),
        'fc1_w':   u(keys[4], (80, 160), 160),
        'fc1_b':   u(keys[5], (80,), 160),
        'fc2_w':   u(keys[6], (10, 80), 80),
        'fc2_b':   u(keys[7], (10,), 80),
    }


if __name__ == "__main__":
    key = jax.random.PRNGKey(0)
    pkey, xkey, xkey2 = jax.random.split(key, 3)
    params = init_params(pkey)
    prepared = prepare_params(params)          # one-time weight repack

    fwd = jax.jit(testnet_forward)

    # fc1 expects 160 = 10*4*4 features, which forces 28x28 spatial input.
    x = jax.random.normal(xkey, (2, 1, 28, 28), jnp.float32)
    out = jax.block_until_ready(fwd(x, prepared))
    assert out.shape == (2, 10), out.shape
    # rows of log_softmax should exp-sum to ~1
    assert bool(jnp.all(jnp.abs(jnp.sum(jnp.exp(out), axis=1) - 1.0) < 1e-4))
    # match the plain-JAX reference
    ref = jax.block_until_ready(_reference_forward(x, params))
    err = float(jnp.max(jnp.abs(out - ref)))
    assert err < 5e-3, f"max abs error vs reference: {err}"

    # Multi-tile path (T >= 2, padded batch) sanity check.
    x2 = jax.random.normal(xkey2, (20, 1, 28, 28), jnp.float32)
    out2 = jax.block_until_ready(fwd(x2, prepared))
    assert out2.shape == (20, 10), out2.shape
    assert bool(jnp.all(jnp.isfinite(out2)))
    assert bool(jnp.all(jnp.abs(jnp.sum(jnp.exp(out2), axis=1) - 1.0) < 1e-4))
    ref2 = jax.block_until_ready(_reference_forward(x2, params))
    err2 = float(jnp.max(jnp.abs(out2 - ref2)))
    assert err2 < 1e-2, f"max abs error vs reference (multi-tile): {err2}"

    print("KERNEL_OK")
</pallas_src>

<mosaic_0001>
module attributes {stable_mosaic.version = 11 : i64} {
  func.func @kernel(%arg0: i32, %arg1: memref<96x168xf32, #tpu.memory_space<vmem>>, %arg2: memref<168x512xf32, #tpu.memory_space<vmem>>, %arg3: memref<768x512xf32, #tpu.memory_space<vmem>>, %arg4: memref<512x128xf32, #tpu.memory_space<vmem>>, %arg5: memref<128x128xf32, #tpu.memory_space<vmem>>, %arg6: memref<1x128xf32, #tpu.memory_space<vmem>>, %arg7: memref<1x128xf32, #tpu.memory_space<vmem>>, %arg8: memref<1x128xf32, #tpu.memory_space<vmem>>, %arg9: memref<1x128xf32, #tpu.memory_space<vmem>>, %arg10: memref<8x128xf32, #tpu.memory_space<vmem>>) attributes {dimension_semantics = [#tpu.dimension_semantics<parallel>], iteration_bounds = array<i64: 1>, scalar_prefetch = 0 : i64, scratch_operands = 0 : i64, tpu.core_type = #tpu.core_type<tc>, window_params = [{transform_indices = @transform_0, window_bounds = array<i64: 96, 168>}, {pipeline_mode = #tpu.pipeline_mode<synchronous>, transform_indices = @transform_1, window_bounds = array<i64: 168, 512>}, {pipeline_mode = #tpu.pipeline_mode<synchronous>, transform_indices = @transform_2, window_bounds = array<i64: 768, 512>}, {pipeline_mode = #tpu.pipeline_mode<synchronous>, transform_indices = @transform_3, window_bounds = array<i64: 512, 128>}, {pipeline_mode = #tpu.pipeline_mode<synchronous>, transform_indices = @transform_4, window_bounds = array<i64: 128, 128>}, {pipeline_mode = #tpu.pipeline_mode<synchronous>, transform_indices = @transform_5, window_bounds = array<i64: 1, 128>}, {pipeline_mode = #tpu.pipeline_mode<synchronous>, transform_indices = @transform_6, window_bounds = array<i64: 1, 128>}, {pipeline_mode = #tpu.pipeline_mode<synchronous>, transform_indices = @transform_7, window_bounds = array<i64: 1, 128>}, {pipeline_mode = #tpu.pipeline_mode<synchronous>, transform_indices = @transform_8, window_bounds = array<i64: 1, 128>}, {transform_indices = @transform_9, window_bounds = array<i64: 8, 128>}]} {
    %c0 = arith.constant 0 : index
    %c0_0 = arith.constant 0 : index
    %0 = vector.load %arg1[%c0, %c0_0] : memref<96x168xf32, #tpu.memory_space<vmem>>, vector<96x168xf32>
    %c0_1 = arith.constant 0 : index
    %c0_2 = arith.constant 0 : index
    %1 = vector.load %arg2[%c0_1, %c0_2] : memref<168x512xf32, #tpu.memory_space<vmem>>, vector<168x512xf32>
    %cst = arith.constant dense<0.000000e+00> : vector<96x512xf32>
    %2 = tpu.matmul %0, %1, %cst {dimension_numbers = #tpu.dot_dimension_numbers<[1], [0], [0], [1], [0, 0, 1, 1], [], []>} : vector<96x168xf32>, vector<168x512xf32>, vector<96x512xf32> -> vector<96x512xf32>
    %3 = vector.extract_strided_slice %2 {offsets = [0, 0], sizes = [96, 128], strides = [1, 1]} : vector<96x512xf32> to vector<96x128xf32>
    %4 = vector.extract_strided_slice %2 {offsets = [0, 128], sizes = [96, 128], strides = [1, 1]} : vector<96x512xf32> to vector<96x128xf32>
    %5 = arith.maximumf %3, %4 : vector<96x128xf32>
    %6 = vector.extract_strided_slice %2 {offsets = [0, 256], sizes = [96, 128], strides = [1, 1]} : vector<96x512xf32> to vector<96x128xf32>
    %7 = vector.extract_strided_slice %2 {offsets = [0, 384], sizes = [96, 128], strides = [1, 1]} : vector<96x512xf32> to vector<96x128xf32>
    %8 = arith.maximumf %6, %7 : vector<96x128xf32>
    %9 = arith.maximumf %5, %8 : vector<96x128xf32>
    %c0_3 = arith.constant 0 : index
    %c0_4 = arith.constant 0 : index
    %10 = vector.load %arg6[%c0_3, %c0_4] : memref<1x128xf32, #tpu.memory_space<vmem>>, vector<1x128xf32>
    %11 = vector.broadcast %10 : vector<1x128xf32> to vector<96x128xf32>
    %12 = arith.addf %9, %11 : vector<96x128xf32>
    %cst_5 = arith.constant 0.000000e+00 : f32
    %13 = vector.broadcast %cst_5 : f32 to vector<96x128xf32>
    %14 = arith.maximumf %12, %13 : vector<96x128xf32>
    %15 = vector.extract_strided_slice %14 {offsets = [0, 0], sizes = [32, 128], strides = [1, 1]} : vector<96x128xf32> to vector<32x128xf32>
    %16 = vector.extract_strided_slice %14 {offsets = [48, 0], sizes = [32, 128], strides = [1, 1]} : vector<96x128xf32> to vector<32x128xf32>
    %17 = vector.extract_strided_slice %14 {offsets = [8, 0], sizes = [32, 128], strides = [1, 1]} : vector<96x128xf32> to vector<32x128xf32>
    %18 = vector.extract_strided_slice %14 {offsets = [56, 0], sizes = [32, 128], strides = [1, 1]} : vector<96x128xf32> to vector<32x128xf32>
    %19 = vector.extract_strided_slice %14 {offsets = [16, 0], sizes = [32, 128], strides = [1, 1]} : vector<96x128xf32> to vector<32x128xf32>
    %20 = vector.extract_strided_slice %14 {offsets = [64, 0], sizes = [32, 128], strides = [1, 1]} : vector<96x128xf32> to vector<32x128xf32>
    %21 = tpu.concatenate %15, %16, %17, %18, %19, %20 in 1 : vector<32x128xf32>, vector<32x128xf32>, vector<32x128xf32>, vector<32x128xf32>, vector<32x128xf32>, vector<32x128xf32> -> vector<32x768xf32>
    %c0_6 = arith.constant 0 : index
    %c0_7 = arith.constant 0 : index
    %22 = vector.load %arg3[%c0_6, %c0_7] : memref<768x512xf32, #tpu.memory_space<vmem>>, vector<768x512xf32>
    %cst_8 = arith.constant dense<0.000000e+00> : vector<32x512xf32>
    %23 = tpu.matmul %21, %22, %cst_8 {dimension_numbers = #tpu.dot_dimension_numbers<[1], [0], [0], [1], [0, 0, 1, 1], [], []>} : vector<32x768xf32>, vector<768x512xf32>, vector<32x512xf32> -> vector<32x512xf32>
    %24 = vector.extract_strided_slice %23 {offsets = [0, 0], sizes = [32, 128], strides = [1, 1]} : vector<32x512xf32> to vector<32x128xf32>
    %25 = vector.extract_strided_slice %23 {offsets = [0, 128], sizes = [32, 128], strides = [1, 1]} : vector<32x512xf32> to vector<32x128xf32>
    %26 = arith.maximumf %24, %25 : vector<32x128xf32>
    %27 = vector.extract_strided_slice %23 {offsets = [0, 256], sizes = [32, 128], strides = [1, 1]} : vector<32x512xf32> to vector<32x128xf32>
    %28 = vector.extract_strided_slice %23 {offsets = [0, 384], sizes = [32, 128], strides = [1, 1]} : vector<32x512xf32> to vector<32x128xf32>
    %29 = arith.maximumf %27, %28 : vector<32x128xf32>
    %30 = arith.maximumf %26, %29 : vector<32x128xf32>
    %c0_9 = arith.constant 0 : index
    %c0_10 = arith.constant 0 : index
    %31 = vector.load %arg7[%c0_9, %c0_10] : memref<1x128xf32, #tpu.memory_space<vmem>>, vector<1x128xf32>
    %32 = vector.broadcast %31 : vector<1x128xf32> to vector<32x128xf32>
    %33 = arith.addf %30, %32 : vector<32x128xf32>
    %cst_11 = arith.constant 0.000000e+00 : f32
    %34 = vector.broadcast %cst_11 : f32 to vector<32x128xf32>
    %35 = arith.maximumf %33, %34 : vector<32x128xf32>
    %36 = vector.extract_strided_slice %35 {offsets = [0, 0], sizes = [8, 128], strides = [1, 1]} : vector<32x128xf32> to vector<8x128xf32>
    %37 = vector.extract_strided_slice %35 {offsets = [8, 0], sizes = [8, 128], strides = [1, 1]} : vector<32x128xf32> to vector<8x128xf32>
    %38 = vector.extract_strided_slice %35 {offsets = [16, 0], sizes = [8, 128], strides = [1, 1]} : vector<32x128xf32> to vector<8x128xf32>
    %39 = vector.extract_strided_slice %35 {offsets = [24, 0], sizes = [8, 128], strides = [1, 1]} : vector<32x128xf32> to vector<8x128xf32>
    %40 = tpu.concatenate %36, %37, %38, %39 in 1 : vector<8x128xf32>, vector<8x128xf32>, vector<8x128xf32>, vector<8x128xf32> -> vector<8x512xf32>
    %c0_12 = arith.constant 0 : index
    %c0_13 = arith.constant 0 : index
    %41 = vector.load %arg4[%c0_12, %c0_13] : memref<512x128xf32, #tpu.memory_space<vmem>>, vector<512x128xf32>
    %cst_14 = arith.constant dense<0.000000e+00> : vector<8x128xf32>
    %42 = tpu.matmul %40, %41, %cst_14 {dimension_numbers = #tpu.dot_dimension_numbers<[1], [0], [0], [1], [0, 0, 1, 1], [], []>} : vector<8x512xf32>, vector<512x128xf32>, vector<8x128xf32> -> vector<8x128xf32>
    %c0_15 = arith.constant 0 : index
    %c0_16 = arith.constant 0 : index
    %43 = vector.load %arg8[%c0_15, %c0_16] : memref<1x128xf32, #tpu.memory_space<vmem>>, vector<1x128xf32>
    %44 = vector.broadcast %43 : vector<1x128xf32> to vector<8x128xf32>
    %45 = arith.addf %42, %44 : vector<8x128xf32>
    %cst_17 = arith.constant 0.000000e+00 : f32
    %46 = vector.broadcast %cst_17 : f32 to vector<8x128xf32>
    %47 = arith.maximumf %45, %46 : vector<8x128xf32>
    %c0_18 = arith.constant 0 : index
    %c0_19 = arith.constant 0 : index
    %48 = vector.load %arg5[%c0_18, %c0_19] : memref<128x128xf32, #tpu.memory_space<vmem>>, vector<128x128xf32>
    %cst_20 = arith.constant dense<0.000000e+00> : vector<8x128xf32>
    %49 = tpu.matmul %47, %48, %cst_20 {dimension_numbers = #tpu.dot_dimension_numbers<[1], [0], [0], [1], [0, 0, 1, 1], [], []>} : vector<8x128xf32>, vector<128x128xf32>, vector<8x128xf32> -> vector<8x128xf32>
    %c0_21 = arith.constant 0 : index
    %c0_22 = arith.constant 0 : index
    %50 = vector.load %arg9[%c0_21, %c0_22] : memref<1x128xf32, #tpu.memory_space<vmem>>, vector<1x128xf32>
    %51 = vector.broadcast %50 : vector<1x128xf32> to vector<8x128xf32>
    %52 = arith.addf %49, %51 : vector<8x128xf32>
    %cst_23 = arith.constant dense<0xFF800000> : vector<8xf32>
    %53 = vector.multi_reduction <maximumf>, %52, %cst_23 [1] : vector<8x128xf32> to vector<8xf32>
    %54 = vector.shape_cast %53 : vector<8xf32> to vector<8x1xf32>
    %55 = vector.broadcast %54 : vector<8x1xf32> to vector<8x128xf32>
    %56 = arith.subf %52, %55 : vector<8x128xf32>
    %57 = math.exp %56 : vector<8x128xf32>
    %cst_24 = arith.constant dense<0.000000e+00> : vector<8xf32>
    %58 = vector.multi_reduction <add>, %57, %cst_24 [1] : vector<8x128xf32> to vector<8xf32>
    %59 = vector.shape_cast %58 : vector<8xf32> to vector<8x1xf32>
    %60 = math.log %59 : vector<8x1xf32>
    %61 = vector.broadcast %60 : vector<8x1xf32> to vector<8x128xf32>
    %62 = arith.subf %56, %61 : vector<8x128xf32>
    %c0_25 = arith.constant 0 : index
    %c0_26 = arith.constant 0 : index
    %63 = vector.load %arg10[%c0_25, %c0_26] : memref<8x128xf32, #tpu.memory_space<vmem>>, vector<8x128xf32>
    tpu.vector_store %arg10[%c0_25, %c0_26], %62 {strides = array<i32>} : memref<8x128xf32, #tpu.memory_space<vmem>>, vector<8x128xf32>,
    return
  }
  func.func @transform_0(%arg0: i32) -> (i32, i32) {
    %c0_i32 = arith.constant 0 : i32
    %c0_i32_0 = arith.constant 0 : i32
    return %arg0, %c0_i32 : i32, i32
  }
  func.func @transform_1(%arg0: i32) -> (i32, i32) {
    %c0_i32 = arith.constant 0 : i32
    %c0_i32_0 = arith.constant 0 : i32
    %c0_i32_1 = arith.constant 0 : i32
    return %c0_i32, %c0_i32_0 : i32, i32
  }
  func.func @transform_2(%arg0: i32) -> (i32, i32) {
    %c0_i32 = arith.constant 0 : i32
    %c0_i32_0 = arith.constant 0 : i32
    %c0_i32_1 = arith.constant 0 : i32
    return %c0_i32, %c0_i32_0 : i32, i32
  }
  func.func @transform_3(%arg0: i32) -> (i32, i32) {
    %c0_i32 = arith.constant 0 : i32
    %c0_i32_0 = arith.constant 0 : i32
    %c0_i32_1 = arith.constant 0 : i32
    return %c0_i32, %c0_i32_0 : i32, i32
  }
  func.func @transform_4(%arg0: i32) -> (i32, i32) {
    %c0_i32 = arith.constant 0 : i32
    %c0_i32_0 = arith.constant 0 : i32
    %c0_i32_1 = arith.constant 0 : i32
    return %c0_i32, %c0_i32_0 : i32, i32
  }
  func.func @transform_5(%arg0: i32) -> (i32, i32) {
    %c0_i32 = arith.constant 0 : i32
    %c0_i32_0 = arith.constant 0 : i32
    %c0_i32_1 = arith.constant 0 : i32
    return %c0_i32, %c0_i32_0 : i32, i32
  }
  func.func @transform_6(%arg0: i32) -> (i32, i32) {
    %c0_i32 = arith.constant 0 : i32
    %c0_i32_0 = arith.constant 0 : i32
    %c0_i32_1 = arith.constant 0 : i32
    return %c0_i32, %c0_i32_0 : i32, i32
  }
  func.func @transform_7(%arg0: i32) -> (i32, i32) {
    %c0_i32 = arith.constant 0 : i32
    %c0_i32_0 = arith.constant 0 : i32
    %c0_i32_1 = arith.constant 0 : i32
    return %c0_i32, %c0_i32_0 : i32, i32
  }
  func.func @transform_8(%arg0: i32) -> (i32, i32) {
    %c0_i32 = arith.constant 0 : i32
    %c0_i32_0 = arith.constant 0 : i32
    %c0_i32_1 = arith.constant 0 : i32
    return %c0_i32, %c0_i32_0 : i32, i32
  }
  func.func @transform_9(%arg0: i32) -> (i32, i32) {
    %c0_i32 = arith.constant 0 : i32
    %c0_i32_0 = arith.constant 0 : i32
    return %arg0, %c0_i32 : i32, i32
  }
}

</mosaic_0001>

<llo_original>
// kernel: testnet_forward.1
$region0: #{testnet_forward.1}
  #allocation0 [shape = 'u32[]', space=smem, size = 0x4, offset = 0x4, fixed_abs, tag = 'smem constant byte address 0x4 - core index']
  #allocation1 [shape = 'u32[144,128]{1,0:T(1,128)}', space=vmem, size = 0x12000, scoped, tag = 'internal scratch']
  %s0 = inlined_call_operand.vmem [shape: f32[96,168], index: 0, kind: input, shape index: {}]
  %s1 = inlined_call_operand.hbm [shape: f32[168,512], index: 1, kind: input, shape index: {}]
  %s2 = inlined_call_operand.vmem [shape: f32[768,512], index: 2, kind: input, shape index: {}]
  %s3 = inlined_call_operand.hbm [shape: f32[512,128], index: 3, kind: input, shape index: {}]
  %s4 = inlined_call_operand.vmem [shape: f32[128,128], index: 4, kind: input, shape index: {}]
  %s5 = inlined_call_operand.vmem [shape: f32[1,128], index: 5, kind: input, shape index: {}]
  %s6 = inlined_call_operand.vmem [shape: f32[1,128], index: 6, kind: input, shape index: {}]
  %s7 = inlined_call_operand.vmem [shape: f32[1,128], index: 7, kind: input, shape index: {}]
  %s8 = inlined_call_operand.vmem [shape: f32[1,128], index: 8, kind: input, shape index: {}]
  %s9 = inlined_call_operand.vmem [shape: f32[8,128], index: 9, kind: output, shape index: {}]
  %s10 = sld [smem:[#allocation0]]
  $region54: #{testnet_forward.1} parent=0
    _
  %s12 = ssub.s32 1, %s10
  %s13 = scalar_select 0, %s12, %s10
  $region1: #{testnet_forward.1} parent=0
    #allocation2 [shape = 'u8[344064]{0}', space=vmem, size = 0x54000, scoped, tag = 'input window, operand 1, single buffered']
    #allocation3 [shape = 's32[1]{0}', space=sflag, size = 0x4, scoped, tag = 'scoped memory for testnet_forward.1']
    #allocation4 [shape = 'u8[262144]{0}', space=vmem, size = 0x40000, scoped, tag = 'input window, operand 3, single buffered']
    #allocation5 [shape = 's32[1]{0}', space=sflag, size = 0x4, scoped, tag = 'scoped memory for testnet_forward.1']
    %14 = vsyncpa [#allocation3], 0
    %15 = vsyncpa [#allocation5], 0
    // Predicated region
    $region2: #{testnet_forward.1} parent=1 // pred_check
      _
    $region3: #{testnet_forward.1} parent=1 // pred_check_branch
      %17 = sbr.rel (0) target = $region5
    $region4: #{testnet_forward.1} parent=1 // pred_region
      _
    $region5: #{testnet_forward.1} parent=1 // pred_fallthru
      _
    // Predicated region
    $region6: #{testnet_forward.1} parent=1 // pred_check
      _
    $region7: #{testnet_forward.1} parent=1 // pred_check_branch
      %19 = sbr.rel (0) target = $region9
    $region8: #{testnet_forward.1} parent=1 // pred_region
      %s21 = ssub.s32 10752, 10752
      %22 = vsyncadd [#allocation3], %s21
      %s23 = sshll.u32 [#allocation2], 4
      %s24 = int_to_ptr.vmem [resolvable:$true] %s23
      %29 = dma.hbm_to_vmem [thread:$0]  %s1, 10752, %s24, [#allocation3], 512, 512, 32
    $region9: #{testnet_forward.1} parent=1 // pred_fallthru
      _
    // Predicated region
    $region10: #{testnet_forward.1} parent=1 // pred_check
      _
    $region11: #{testnet_forward.1} parent=1 // pred_check_branch
      %31 = sbr.rel (0) target = $region13
    $region12: #{testnet_forward.1} parent=1 // pred_region
      _
    $region13: #{testnet_forward.1} parent=1 // pred_fallthru
      _
    // Predicated region
    $region14: #{testnet_forward.1} parent=1 // pred_check
      _
    $region15: #{testnet_forward.1} parent=1 // pred_check_branch
      %33 = sbr.rel (0) target = $region17
    $region16: #{testnet_forward.1} parent=1 // pred_region
      %s35 = ssub.s32 8192, 8192
      %36 = vsyncadd [#allocation5], %s35
      %s37 = sshll.u32 [#allocation4], 4
      %s38 = int_to_ptr.vmem [resolvable:$true] %s37
      %43 = dma.hbm_to_vmem [thread:$0]  %s3, 8192, %s38, [#allocation5], 128, 128, 8
    $region17: #{testnet_forward.1} parent=1 // pred_fallthru
      _
    // Predicated region
    $region18: #{testnet_forward.1} parent=1 // pred_check
      _
    $region19: #{testnet_forward.1} parent=1 // pred_check_branch
      %45 = sbr.rel (0) target = $region21
    $region20: #{testnet_forward.1} parent=1 // pred_region
      _
    $region21: #{testnet_forward.1} parent=1 // pred_fallthru
      _
    // Predicated region
    $region22: #{testnet_forward.1} parent=1 // pred_check
      _
    $region23: #{testnet_forward.1} parent=1 // pred_check_branch
      %47 = sbr.rel (0) target = $region25
    $region24: #{testnet_forward.1} parent=1 // pred_region
      _
    $region25: #{testnet_forward.1} parent=1 // pred_fallthru
      _
    // Predicated region
    $region26: #{testnet_forward.1} parent=1 // pred_check
      _
    $region27: #{testnet_forward.1} parent=1 // pred_check_branch
      %49 = sbr.rel (0) target = $region29
    $region28: #{testnet_forward.1} parent=1 // pred_region
      _
    $region29: #{testnet_forward.1} parent=1 // pred_fallthru
      _
    // Predicated region
    $region30: #{testnet_forward.1} parent=1 // pred_check
      _
    $region31: #{testnet_forward.1} parent=1 // pred_check_branch
      %51 = sbr.rel (0) target = $region33
    $region32: #{testnet_forward.1} parent=1 // pred_region
      _
    $region33: #{testnet_forward.1} parent=1 // pred_fallthru
      _
    // Predicated region
    $region34: #{testnet_forward.1} parent=1 // pred_check
      _
    $region35: #{testnet_forward.1} parent=1 // pred_check_branch
      %53 = sbr.rel (0) target = $region37
    $region36: #{testnet_forward.1} parent=1 // pred_region
      _
    $region37: #{testnet_forward.1} parent=1 // pred_fallthru
      _
    // Predicated region
    $region38: #{testnet_forward.1} parent=1 // pred_check
      _
    $region39: #{testnet_forward.1} parent=1 // pred_check_branch
      %55 = sbr.rel (0) target = $region41
    $region40: #{testnet_forward.1} parent=1 // pred_region
      %56 = dma.done [#allocation3], 10752
    $region41: #{testnet_forward.1} parent=1 // pred_fallthru
      _
    // Predicated region
    $region42: #{testnet_forward.1} parent=1 // pred_check
      _
    $region43: #{testnet_forward.1} parent=1 // pred_check_branch
      %58 = sbr.rel (0) target = $region45
    $region44: #{testnet_forward.1} parent=1 // pred_region
      %59 = dma.done [#allocation5], 8192
    $region45: #{testnet_forward.1} parent=1 // pred_fallthru
      _
    %v60 = vld [vmem:[%s0] sm:$0xff]
    %v61 = vld [vmem:[%s0 + $0x8] sm:$0xff]
    %v62 = vld [vmem:[%s0 + $0x10] sm:$0xff]
    %v63 = vld [vmem:[%s0 + $0x18] sm:$0xff]
    %v64 = vld [vmem:[%s0 + $0x20] sm:$0xff]
    %v65 = vld [vmem:[%s0 + $0x28] sm:$0xff]
    %v66 = vld [vmem:[%s0 + $0x30] sm:$0xff]
    %v67 = vld [vmem:[%s0 + $0x38] sm:$0xff]
    %v68 = vld [vmem:[%s0 + $0x40] sm:$0xff]
    %v69 = vld [vmem:[%s0 + $0x48] sm:$0xff]
    %v70 = vld [vmem:[%s0 + $0x50] sm:$0xff]
    %v71 = vld [vmem:[%s0 + $0x58] sm:$0xff]
    %v72 = vld [vmem:[%s0 + $0x60] sm:$0xff]
    %v73 = vld [vmem:[%s0 + $0x68] sm:$0xff]
    %v74 = vld [vmem:[%s0 + $0x70] sm:$0xff]
    %v75 = vld [vmem:[%s0 + $0x78] sm:$0xff]
    %v76 = vld [vmem:[%s0 + $0x80] sm:$0xff]
    %v77 = vld [vmem:[%s0 + $0x88] sm:$0xff]
    %v78 = vld [vmem:[%s0 + $0x90] sm:$0xff]
    %v79 = vld [vmem:[%s0 + $0x98] sm:$0xff]
    %v80 = vld [vmem:[%s0 + $0xa0] sm:$0xff]
    %v81 = vld [vmem:[%s0 + $0xa8] sm:$0xff]
    %v82 = vld [vmem:[%s0 + $0xb0] sm:$0xff]
    %v83 = vld [vmem:[%s0 + $0xb8] sm:$0xff]
    %v84 = vld [vmem:[#allocation2] sm:$0xff]
    %v85 = vld [vmem:[#allocation2 + $0x8] sm:$0xff]
    %v86 = vld [vmem:[#allocation2 + $0x10] sm:$0xff]
    %v87 = vld [vmem:[#allocation2 + $0x18] sm:$0xff]
    %v88 = vld [vmem:[#allocation2 + $0x20] sm:$0xff]
    %v89 = vld [vmem:[#allocation2 + $0x28] sm:$0xff]
    %v90 = vld [vmem:[#allocation2 + $0x30] sm:$0xff]
    %v91 = vld [vmem:[#allocation2 + $0x38] sm:$0xff]
    %v92 = vld [vmem:[#allocation2 + $0x40] sm:$0xff]
    %v93 = vld [vmem:[#allocation2 + $0x48] sm:$0xff]
    %v94 = vld [vmem:[#allocation2 + $0x50] sm:$0xff]
    %v95 = vld [vmem:[#allocation2 + $0x58] sm:$0xff]
    %v96 = vld [vmem:[#allocation2 + $0x60] sm:$0xff]
    %v97 = vld [vmem:[#allocation2 + $0x68] sm:$0xff]
    %v98 = vld [vmem:[#allocation2 + $0x70] sm:$0xff]
    %v99 = vld [vmem:[#allocation2 + $0x78] sm:$0xff]
    %v100 = vld [vmem:[#allocation2 + $0x80] sm:$0xff]
    %v101 = vld [vmem:[#allocation2 + $0x88] sm:$0xff]
    %v102 = vld [vmem:[#allocation2 + $0x90] sm:$0xff]
    %v103 = vld [vmem:[#allocation2 + $0x98] sm:$0xff]
    %v104 = vld [vmem:[#allocation2 + $0xa0] sm:$0xff]
    %v105 = vld [vmem:[#allocation2 + $0xa8] sm:$0xff]
    %v106 = vld [vmem:[#allocation2 + $0xb0] sm:$0xff]
    %v107 = vld [vmem:[#allocation2 + $0xb8] sm:$0xff]
    %v108 = vld [vmem:[#allocation2 + $0xc0] sm:$0xff]
    %v109 = vld [vmem:[#allocation2 + $0xc8] sm:$0xff]
    %v110 = vld [vmem:[#allocation2 + $0xd0] sm:$0xff]
    %v111 = vld [vmem:[#allocation2 + $0xd8] sm:$0xff]
    %v112 = vld [vmem:[#allocation2 + $0xe0] sm:$0xff]
    %v113 = vld [vmem:[#allocation2 + $0xe8] sm:$0xff]
    %v114 = vld [vmem:[#allocation2 + $0xf0] sm:$0xff]
    %v115 = vld [vmem:[#allocation2 + $0xf8] sm:$0xff]
    %v116 = vld [vmem:[#allocation2 + $0x100] sm:$0xff]
    %v117 = vld [vmem:[#allocation2 + $0x108] sm:$0xff]
    %v118 = vld [vmem:[#allocation2 + $0x110] sm:$0xff]
    %v119 = vld [vmem:[#allocation2 + $0x118] sm:$0xff]
    %v120 = vld [vmem:[#allocation2 + $0x120] sm:$0xff]
    %v121 = vld [vmem:[#allocation2 + $0x128] sm:$0xff]
    %v122 = vld [vmem:[#allocation2 + $0x130] sm:$0xff]
    %v123 = vld [vmem:[#allocation2 + $0x138] sm:$0xff]
    %v124 = vld [vmem:[#allocation2 + $0x140] sm:$0xff]
    %v125 = vld [vmem:[#allocation2 + $0x148] sm:$0xff]
    %v126 = vld [vmem:[#allocation2 + $0x150] sm:$0xff]
    %v127 = vld [vmem:[#allocation2 + $0x158] sm:$0xff]
    %v128 = vld [vmem:[#allocation2 + $0x160] sm:$0xff]
    %v129 = vld [vmem:[#allocation2 + $0x168] sm:$0xff]
    %v130 = vld [vmem:[#allocation2 + $0x170] sm:$0xff]
    %v131 = vld [vmem:[#allocation2 + $0x178] sm:$0xff]
    %v132 = vld [vmem:[#allocation2 + $0x180] sm:$0xff]
    %v133 = vld [vmem:[#allocation2 + $0x188] sm:$0xff]
    %v134 = vld [vmem:[#allocation2 + $0x190] sm:$0xff]
    %v135 = vld [vmem:[#allocation2 + $0x198] sm:$0xff]
    %v136 = vld [vmem:[#allocation2 + $0x1a0] sm:$0xff]
    %v137 = vld [vmem:[#allocation2 + $0x1a8] sm:$0xff]
    %v138 = vld [vmem:[#allocation2 + $0x1b0] sm:$0xff]
    %v139 = vld [vmem:[#allocation2 + $0x1b8] sm:$0xff]
    %v140 = vld [vmem:[#allocation2 + $0x1c0] sm:$0xff]
    %v141 = vld [vmem:[#allocation2 + $0x1c8] sm:$0xff]
    %v142 = vld [vmem:[#allocation2 + $0x1d0] sm:$0xff]
    %v143 = vld [vmem:[#allocation2 + $0x1d8] sm:$0xff]
    %v144 = vld [vmem:[#allocation2 + $0x1e0] sm:$0xff]
    %v145 = vld [vmem:[#allocation2 + $0x1e8] sm:$0xff]
    %v146 = vld [vmem:[#allocation2 + $0x1f0] sm:$0xff]
    %v147 = vld [vmem:[#allocation2 + $0x1f8] sm:$0xff]
    %v148 = vld [vmem:[#allocation2 + $0x200] sm:$0xff]
    %v149 = vld [vmem:[#allocation2 + $0x208] sm:$0xff]
    %v150 = vld [vmem:[#allocation2 + $0x210] sm:$0xff]
    %v151 = vld [vmem:[#allocation2 + $0x218] sm:$0xff]
    %v152 = vld [vmem:[#allocation2 + $0x220] sm:$0xff]
    %v153 = vld [vmem:[#allocation2 + $0x228] sm:$0xff]
    %v154 = vld [vmem:[#allocation2 + $0x230] sm:$0xff]
    %v155 = vld [vmem:[#allocation2 + $0x238] sm:$0xff]
    %v156 = vld [vmem:[#allocation2 + $0x240] sm:$0xff]
    %v157 = vld [vmem:[#allocation2 + $0x248] sm:$0xff]
    %v158 = vld [vmem:[#allocation2 + $0x250] sm:$0xff]
    %v159 = vld [vmem:[#allocation2 + $0x258] sm:$0xff]
    %v160 = vld [vmem:[#allocation2 + $0x260] sm:$0xff]
    %v161 = vld [vmem:[#allocation2 + $0x268] sm:$0xff]
    %v162 = vld [vmem:[#allocation2 + $0x270] sm:$0xff]
    %v163 = vld [vmem:[#allocation2 + $0x278] sm:$0xff]
    %v164 = vld [vmem:[#allocation2 + $0x280] sm:$0xff]
    %v165 = vld [vmem:[#allocation2 + $0x288] sm:$0xff]
    %v166 = vld [vmem:[#allocation2 + $0x290] sm:$0xff]
    %v167 = vld [vmem:[#allocation2 + $0x298] sm:$0xff]
    %vm168 = vcmask 326656
    %v170 = vsel %vm168, %v61, 0
    %v173 = vsel %vm168, %v63, 0
    %v176 = vsel %vm168, %v65, 0
    %v179 = vsel %vm168, %v67, 0
    %v182 = vsel %vm168, %v69, 0
    %v185 = vsel %vm168, %v71, 0
    %v188 = vsel %vm168, %v73, 0
    %v191 = vsel %vm168, %v75, 0
    %v194 = vsel %vm168, %v77, 0
    %v197 = vsel %vm168, %v79, 0
    %v200 = vsel %vm168, %v81, 0
    %v203 = vsel %vm168, %v83, 0
    %205 = vmatprep.subr.mxu0 %v145
    %206 = vmatpush1.msra.mxu0 %v144
    %207 = vmatprep.subr.mxu0 %v141
    %208 = vmatpush1.msra.mxu0 %v140
    %209 = vmatprep.subr.mxu0 %v137
    %210 = vmatpush1.msra.mxu0 %v136
    %211 = vmatprep.subr.mxu0 %v133
    %212 = vmatpush1.msra.mxu0 %v132
    %213 = vmatprep.subr.mxu0 %v129
    %214 = vmatpush1.msra.mxu0 %v128
    %215 = vmatprep.subr.mxu0 %v125
    %216 = vmatpush1.msra.mxu0 %v124
    %217 = vmatprep.subr.mxu0 %v121
    %218 = vmatpush1.msra.mxu0 %v120
    %219 = vmatprep.subr.mxu0 %v117
    %220 = vmatpush1.msra.mxu0 %v116
    %221 = vmatprep.subr.mxu0 %v113
    %222 = vmatpush1.msra.mxu0 %v112
    %223 = vmatprep.subr.mxu0 %v109
    %224 = vmatpush1.msra.mxu0 %v108
    %225 = vmatprep.subr.mxu0 %v105
    %226 = vmatpush1.msra.mxu0 %v104
    %227 = vmatprep.subr.mxu0 %v101
    %228 = vmatpush1.msra.mxu0 %v100
    %229 = vmatprep.subr.mxu0 %v97
    %230 = vmatpush1.msra.mxu0 %v96
    %231 = vmatprep.subr.mxu0 %v93
    %232 = vmatpush1.msra.mxu0 %v92
    %233 = vmatprep.subr.mxu0 %v89
    %234 = vmatpush1.msra.mxu0 %v88
    %235 = vmatprep.subr.mxu0 %v85
    %236 = vmatpush1.msra.mxu0 %v84
    %237 = vmatprep.subr.mxu0 0.0
    %238 = vmatpush2.msra.mxu0 0.0
    %239 = vmatprep.subr.mxu0 0.0
    %240 = vmatpush2.msra.mxu0 0.0
    %241 = vmatprep.subr.mxu0 0.0
    %242 = vmatpush2.msra.mxu0 0.0
    %243 = vmatprep.subr.mxu0 0.0
    %244 = vmatpush2.msra.mxu0 0.0
    %245 = vmatprep.subr.mxu0 0.0
    %246 = vmatpush2.msra.mxu0 0.0
    %247 = vmatprep.subr.mxu0 0.0
    %248 = vmatpush2.msra.mxu0 0.0
    %249 = vmatprep.subr.mxu0 0.0
    %250 = vmatpush2.msra.mxu0 0.0
    %251 = vmatprep.subr.mxu0 0.0
    %252 = vmatpush2.msra.mxu0 0.0
    %253 = vmatprep.subr.mxu0 0.0
    %254 = vmatpush2.msra.mxu0 0.0
    %255 = vmatprep.subr.mxu0 0.0
    %256 = vmatpush2.msra.mxu0 0.0
    %257 = vmatprep.subr.mxu0 0.0
    %258 = vmatpush2.msra.mxu0 0.0
    %259 = vmatprep.subr.mxu0 %v165
    %260 = vmatpush2.msra.mxu0 %v164
    %261 = vmatprep.subr.mxu0 %v161
    %262 = vmatpush2.msra.mxu0 %v160
    %263 = vmatprep.subr.mxu0 %v157
    %264 = vmatpush2.msra.mxu0 %v156
    %265 = vmatprep.subr.mxu0 %v153
    %266 = vmatpush2.msra.mxu0 %v152
    %267 = vmatprep.subr.mxu0 %v149
    %268 = vmatpush2.msra.mxu0 %v148
    %269 = vmatprep.mubr.f32.mxu0 %v170
    %270 = vmatmul.mubr.f32.gmra.mxu0 %v60
    %v271 = vpop.f32.mrf.mxu0
    %v272 = vadd.f32 0.0, %v271
    %v273 = vpop.f32.mrf.mxu0
    %v274 = vadd.f32 0.0, %v273
    %275 = vmatprep.mubr.f32.mxu0 %v173
    %276 = vmatmul.mubr.f32.gmra.mxu0 %v62
    %v277 = vpop.f32.mrf.mxu0
    %v278 = vadd.f32 0.0, %v277
    %v279 = vpop.f32.mrf.mxu0
    %v280 = vadd.f32 0.0, %v279
    %281 = vmatprep.mubr.f32.mxu0 %v176
    %282 = vmatmul.mubr.f32.gmra.mxu0 %v64
    %v283 = vpop.f32.mrf.mxu0
    %v284 = vadd.f32 0.0, %v283
    %v285 = vpop.f32.mrf.mxu0
    %v286 = vadd.f32 0.0, %v285
    %287 = vmatprep.mubr.f32.mxu0 %v179
    %288 = vmatmul.mubr.f32.gmra.mxu0 %v66
    %v289 = vpop.f32.mrf.mxu0
    %v290 = vadd.f32 0.0, %v289
    %v291 = vpop.f32.mrf.mxu0
    %v292 = vadd.f32 0.0, %v291
    %293 = vmatprep.mubr.f32.mxu0 %v182
    %294 = vmatmul.mubr.f32.gmra.mxu0 %v68
    %v295 = vpop.f32.mrf.mxu0
    %v296 = vadd.f32 0.0, %v295
    %v297 = vpop.f32.mrf.mxu0
    %v298 = vadd.f32 0.0, %v297
    %299 = vmatprep.mubr.f32.mxu0 %v185
    %300 = vmatmul.mubr.f32.gmra.mxu0 %v70
    %v301 = vpop.f32.mrf.mxu0
    %v302 = vadd.f32 0.0, %v301
    %v303 = vpop.f32.mrf.mxu0
    %v304 = vadd.f32 0.0, %v303
    %305 = vmatprep.mubr.f32.mxu0 %v188
    %306 = vmatmul.mubr.f32.gmra.mxu0 %v72
    %v307 = vpop.f32.mrf.mxu0
    %v308 = vadd.f32 0.0, %v307
    %v309 = vpop.f32.mrf.mxu0
    %v310 = vadd.f32 0.0, %v309
    %311 = vmatprep.mubr.f32.mxu0 %v191
    %312 = vmatmul.mubr.f32.gmra.mxu0 %v74
    %v313 = vpop.f32.mrf.mxu0
    %v314 = vadd.f32 0.0, %v313
    %v315 = vpop.f32.mrf.mxu0
    %v316 = vadd.f32 0.0, %v315
    %317 = vmatprep.mubr.f32.mxu0 %v194
    %318 = vmatmul.mubr.f32.gmra.mxu0 %v76
    %v319 = vpop.f32.mrf.mxu0
    %v320 = vadd.f32 0.0, %v319
    %v321 = vpop.f32.mrf.mxu0
    %v322 = vadd.f32 0.0, %v321
    %323 = vmatprep.mubr.f32.mxu0 %v197
    %324 = vmatmul.mubr.f32.gmra.mxu0 %v78
    %v325 = vpop.f32.mrf.mxu0
    %v326 = vadd.f32 0.0, %v325
    %v327 = vpop.f32.mrf.mxu0
    %v328 = vadd.f32 0.0, %v327
    %329 = vmatprep.mubr.f32.mxu0 %v200
    %330 = vmatmul.mubr.f32.gmra.mxu0 %v80
    %v331 = vpop.f32.mrf.mxu0
    %v332 = vadd.f32 0.0, %v331
    %v333 = vpop.f32.mrf.mxu0
    %v334 = vadd.f32 0.0, %v333
    %335 = vmatprep.mubr.f32.mxu0 %v203
    %336 = vmatmul.mubr.f32.gmra.mxu0 %v82
    %v337 = vpop.f32.mrf.mxu0
    %v338 = vadd.f32 0.0, %v337
    %v339 = vpop.f32.mrf.mxu0
    %v340 = vadd.f32 0.0, %v339
    %341 = vdwg.mxu0
    %342 = vmatprep.subr.mxu0 %v147
    %343 = vmatpush1.msra.mxu0 %v146
    %344 = vmatprep.subr.mxu0 %v143
    %345 = vmatpush1.msra.mxu0 %v142
    %346 = vmatprep.subr.mxu0 %v139
    %347 = vmatpush1.msra.mxu0 %v138
    %348 = vmatprep.subr.mxu0 %v135
    %349 = vmatpush1.msra.mxu0 %v134
    %350 = vmatprep.subr.mxu0 %v131
    %351 = vmatpush1.msra.mxu0 %v130
    %352 = vmatprep.subr.mxu0 %v127
    %353 = vmatpush1.msra.mxu0 %v126
    %354 = vmatprep.subr.mxu0 %v123
    %355 = vmatpush1.msra.mxu0 %v122
    %356 = vmatprep.subr.mxu0 %v119
    %357 = vmatpush1.msra.mxu0 %v118
    %358 = vmatprep.subr.mxu0 %v115
    %359 = vmatpush1.msra.mxu0 %v114
    %360 = vmatprep.subr.mxu0 %v111
    %361 = vmatpush1.msra.mxu0 %v110
    %362 = vmatprep.subr.mxu0 %v107
    %363 = vmatpush1.msra.mxu0 %v106
    %364 = vmatprep.subr.mxu0 %v103
    %365 = vmatpush1.msra.mxu0 %v102
    %366 = vmatprep.subr.mxu0 %v99
    %367 = vmatpush1.msra.mxu0 %v98
    %368 = vmatprep.subr.mxu0 %v95
    %369 = vmatpush1.msra.mxu0 %v94
    %370 = vmatprep.subr.mxu0 %v91
    %371 = vmatpush1.msra.mxu0 %v90
    %372 = vmatprep.subr.mxu0 %v87
    %373 = vmatpush1.msra.mxu0 %v86
    %374 = vmatprep.subr.mxu0 0.0
    %375 = vmatpush2.msra.mxu0 0.0
    %376 = vmatprep.subr.mxu0 0.0
    %377 = vmatpush2.msra.mxu0 0.0
    %378 = vmatprep.subr.mxu0 0.0
    %379 = vmatpush2.msra.mxu0 0.0
    %380 = vmatprep.subr.mxu0 0.0
    %381 = vmatpush2.msra.mxu0 0.0
    %382 = vmatprep.subr.mxu0 0.0
    %383 = vmatpush2.msra.mxu0 0.0
    %384 = vmatprep.subr.mxu0 0.0
    %385 = vmatpush2.msra.mxu0 0.0
    %386 = vmatprep.subr.mxu0 0.0
    %387 = vmatpush2.msra.mxu0 0.0
    %388 = vmatprep.subr.mxu0 0.0
    %389 = vmatpush2.msra.mxu0 0.0
    %390 = vmatprep.subr.mxu0 0.0
    %391 = vmatpush2.msra.mxu0 0.0
    %392 = vmatprep.subr.mxu0 0.0
    %393 = vmatpush2.msra.mxu0 0.0
    %394 = vmatprep.subr.mxu0 0.0
    %395 = vmatpush2.msra.mxu0 0.0
    %396 = vmatprep.subr.mxu0 %v167
    %397 = vmatpush2.msra.mxu0 %v166
    %398 = vmatprep.subr.mxu0 %v163
    %399 = vmatpush2.msra.mxu0 %v162
    %400 = vmatprep.subr.mxu0 %v159
    %401 = vmatpush2.msra.mxu0 %v158
    %402 = vmatprep.subr.mxu0 %v155
    %403 = vmatpush2.msra.mxu0 %v154
    %404 = vmatprep.subr.mxu0 %v151
    %405 = vmatpush2.msra.mxu0 %v150
    %406 = vmatprep.mubr.f32.mxu0 %v170
    %407 = vmatmul.mubr.f32.gmra.mxu0 %v60
    %v408 = vpop.f32.mrf.mxu0
    %v409 = vadd.f32 0.0, %v408
    %v410 = vpop.f32.mrf.mxu0
    %v411 = vadd.f32 0.0, %v410
    %412 = vmatprep.mubr.f32.mxu0 %v173
    %413 = vmatmul.mubr.f32.gmra.mxu0 %v62
    %v414 = vpop.f32.mrf.mxu0
    %v415 = vadd.f32 0.0, %v414
    %v416 = vpop.f32.mrf.mxu0
    %v417 = vadd.f32 0.0, %v416
    %418 = vmatprep.mubr.f32.mxu0 %v176
    %419 = vmatmul.mubr.f32.gmra.mxu0 %v64
    %v420 = vpop.f32.mrf.mxu0
    %v421 = vadd.f32 0.0, %v420
    %v422 = vpop.f32.mrf.mxu0
    %v423 = vadd.f32 0.0, %v422
    %424 = vmatprep.mubr.f32.mxu0 %v179
    %425 = vmatmul.mubr.f32.gmra.mxu0 %v66
    %v426 = vpop.f32.mrf.mxu0
    %v427 = vadd.f32 0.0, %v426
    %v428 = vpop.f32.mrf.mxu0
    %v429 = vadd.f32 0.0, %v428
    %430 = vmatprep.mubr.f32.mxu0 %v182
    %431 = vmatmul.mubr.f32.gmra.mxu0 %v68
    %v432 = vpop.f32.mrf.mxu0
    %v433 = vadd.f32 0.0, %v432
    %v434 = vpop.f32.mrf.mxu0
    %v435 = vadd.f32 0.0, %v434
    %436 = vmatprep.mubr.f32.mxu0 %v185
    %437 = vmatmul.mubr.f32.gmra.mxu0 %v70
    %v438 = vpop.f32.mrf.mxu0
    %v439 = vadd.f32 0.0, %v438
    %v440 = vpop.f32.mrf.mxu0
    %v441 = vadd.f32 0.0, %v440
    %442 = vmatprep.mubr.f32.mxu0 %v188
    %443 = vmatmul.mubr.f32.gmra.mxu0 %v72
    %v444 = vpop.f32.mrf.mxu0
    %v445 = vadd.f32 0.0, %v444
    %v446 = vpop.f32.mrf.mxu0
    %v447 = vadd.f32 0.0, %v446
    %448 = vmatprep.mubr.f32.mxu0 %v191
    %449 = vmatmul.mubr.f32.gmra.mxu0 %v74
    %v450 = vpop.f32.mrf.mxu0
    %v451 = vadd.f32 0.0, %v450
    %v452 = vpop.f32.mrf.mxu0
    %v453 = vadd.f32 0.0, %v452
    %454 = vmatprep.mubr.f32.mxu0 %v194
    %455 = vmatmul.mubr.f32.gmra.mxu0 %v76
    %v456 = vpop.f32.mrf.mxu0
    %v457 = vadd.f32 0.0, %v456
    %v458 = vpop.f32.mrf.mxu0
    %v459 = vadd.f32 0.0, %v458
    %460 = vmatprep.mubr.f32.mxu0 %v197
    %461 = vmatmul.mubr.f32.gmra.mxu0 %v78
    %v462 = vpop.f32.mrf.mxu0
    %v463 = vadd.f32 0.0, %v462
    %v464 = vpop.f32.mrf.mxu0
    %v465 = vadd.f32 0.0, %v464
    %466 = vmatprep.mubr.f32.mxu0 %v200
    %467 = vmatmul.mubr.f32.gmra.mxu0 %v80
    %v468 = vpop.f32.mrf.mxu0
    %v469 = vadd.f32 0.0, %v468
    %v470 = vpop.f32.mrf.mxu0
    %v471 = vadd.f32 0.0, %v470
    %472 = vmatprep.mubr.f32.mxu0 %v203
    %473 = vmatmul.mubr.f32.gmra.mxu0 %v82
    %v474 = vpop.f32.mrf.mxu0
    %v475 = vadd.f32 0.0, %v474
    %v476 = vpop.f32.mrf.mxu0
    %v477 = vadd.f32 0.0, %v476
    %478 = vdwg.mxu0
    %v479 = vmax.f32 %v272, %v274
    %v480 = vmax.f32 %v278, %v280
    %v481 = vmax.f32 %v284, %v286
    %v482 = vmax.f32 %v290, %v292
    %v483 = vmax.f32 %v296, %v298
    %v484 = vmax.f32 %v302, %v304
    %v485 = vmax.f32 %v308, %v310
    %v486 = vmax.f32 %v314, %v316
    %v487 = vmax.f32 %v320, %v322
    %v488 = vmax.f32 %v326, %v328
    %v489 = vmax.f32 %v332, %v334
    %v490 = vmax.f32 %v338, %v340
    %v491 = vmax.f32 %v409, %v411
    %v492 = vmax.f32 %v415, %v417
    %v493 = vmax.f32 %v421, %v423
    %v494 = vmax.f32 %v427, %v429
    %v495 = vmax.f32 %v433, %v435
    %v496 = vmax.f32 %v439, %v441
    %v497 = vmax.f32 %v445, %v447
    %v498 = vmax.f32 %v451, %v453
    %v499 = vmax.f32 %v457, %v459
    %v500 = vmax.f32 %v463, %v465
    %v501 = vmax.f32 %v469, %v471
    %v502 = vmax.f32 %v475, %v477
    %v503 = vmax.f32 %v479, %v491
    %v504 = vmax.f32 %v480, %v492
    %v505 = vmax.f32 %v481, %v493
    %v506 = vmax.f32 %v482, %v494
    %v507 = vmax.f32 %v483, %v495
    %v508 = vmax.f32 %v484, %v496
    %v509 = vmax.f32 %v485, %v497
    %v510 = vmax.f32 %v486, %v498
    %v511 = vmax.f32 %v487, %v499
    %v512 = vmax.f32 %v488, %v500
    %v513 = vmax.f32 %v489, %v501
    %v514 = vmax.f32 %v490, %v502
    %v515 = vld [vmem:[%s5] sm:$0x1]
    %v517 = vlaneseq
    %v518 = vshrl.u32 %v517, 7
    %v519 = vsub.s32 0, %v518
    %v520 = vrot.slane %v515, %v519
    %v522 = vadd.f32 %v503, %v520
    %v523 = vadd.f32 %v504, %v520
    %v524 = vadd.f32 %v505, %v520
    %v525 = vadd.f32 %v506, %v520
    %v526 = vadd.f32 %v507, %v520
    %v527 = vadd.f32 %v508, %v520
    %v528 = vadd.f32 %v509, %v520
    %v529 = vadd.f32 %v510, %v520
    %v530 = vadd.f32 %v511, %v520
    %v531 = vadd.f32 %v512, %v520
    %v532 = vadd.f32 %v513, %v520
    %v533 = vadd.f32 %v514, %v520
    %v534 = vmax.f32 %v522, 0.0
    %v535 = vmax.f32 %v523, 0.0
    %v536 = vmax.f32 %v524, 0.0
    %v537 = vmax.f32 %v525, 0.0
    %v538 = vmax.f32 %v526, 0.0
    %v539 = vmax.f32 %v527, 0.0
    %v540 = vmax.f32 %v528, 0.0
    %v541 = vmax.f32 %v529, 0.0
    %v542 = vmax.f32 %v530, 0.0
    %v543 = vmax.f32 %v531, 0.0
    %v544 = vmax.f32 %v532, 0.0
    %v545 = vmax.f32 %v533, 0.0
    %v546 = vld [vmem:[%s2] sm:$0xff]
    %v547 = vld [vmem:[%s2 + $0x8] sm:$0xff]
    %v548 = vld [vmem:[%s2 + $0x10] sm:$0xff]
    %v549 = vld [vmem:[%s2 + $0x18] sm:$0xff]
    %v550 = vld [vmem:[%s2 + $0x20] sm:$0xff]
    %v551 = vld [vmem:[%s2 + $0x28] sm:$0xff]
    %v552 = vld [vmem:[%s2 + $0x30] sm:$0xff]
    %v553 = vld [vmem:[%s2 + $0x38] sm:$0xff]
    %v554 = vld [vmem:[%s2 + $0x40] sm:$0xff]
    %v555 = vld [vmem:[%s2 + $0x48] sm:$0xff]
    %v556 = vld [vmem:[%s2 + $0x50] sm:$0xff]
    %v557 = vld [vmem:[%s2 + $0x58] sm:$0xff]
    %v558 = vld [vmem:[%s2 + $0x60] sm:$0xff]
    %v559 = vld [vmem:[%s2 + $0x68] sm:$0xff]
    %v560 = vld [vmem:[%s2 + $0x70] sm:$0xff]
    %v561 = vld [vmem:[%s2 + $0x78] sm:$0xff]
    %v562 = vld [vmem:[%s2 + $0x80] sm:$0xff]
    %v563 = vld [vmem:[%s2 + $0x88] sm:$0xff]
    %v564 = vld [vmem:[%s2 + $0x90] sm:$0xff]
    %v565 = vld [vmem:[%s2 + $0x98] sm:$0xff]
    %v566 = vld [vmem:[%s2 + $0xa0] sm:$0xff]
    %v567 = vld [vmem:[%s2 + $0xa8] sm:$0xff]
    %v568 = vld [vmem:[%s2 + $0xb0] sm:$0xff]
    %v569 = vld [vmem:[%s2 + $0xb8] sm:$0xff]
    %v570 = vld [vmem:[%s2 + $0xc0] sm:$0xff]
    %v571 = vld [vmem:[%s2 + $0xc8] sm:$0xff]
    %v572 = vld [vmem:[%s2 + $0xd0] sm:$0xff]
    %v573 = vld [vmem:[%s2 + $0xd8] sm:$0xff]
    %v574 = vld [vmem:[%s2 + $0xe0] sm:$0xff]
    %v575 = vld [vmem:[%s2 + $0xe8] sm:$0xff]
    %v576 = vld [vmem:[%s2 + $0xf0] sm:$0xff]
    %v577 = vld [vmem:[%s2 + $0xf8] sm:$0xff]
    %v578 = vld [vmem:[%s2 + $0x100] sm:$0xff]
    %v579 = vld [vmem:[%s2 + $0x108] sm:$0xff]
    %v580 = vld [vmem:[%s2 + $0x110] sm:$0xff]
    %v581 = vld [vmem:[%s2 + $0x118] sm:$0xff]
    %v582 = vld [vmem:[%s2 + $0x120] sm:$0xff]
    %v583 = vld [vmem:[%s2 + $0x128] sm:$0xff]
    %v584 = vld [vmem:[%s2 + $0x130] sm:$0xff]
    %v585 = vld [vmem:[%s2 + $0x138] sm:$0xff]
    %v586 = vld [vmem:[%s2 + $0x140] sm:$0xff]
    %v587 = vld [vmem:[%s2 + $0x148] sm:$0xff]
    %v588 = vld [vmem:[%s2 + $0x150] sm:$0xff]
    %v589 = vld [vmem:[%s2 + $0x158] sm:$0xff]
    %v590 = vld [vmem:[%s2 + $0x160] sm:$0xff]
    %v591 = vld [vmem:[%s2 + $0x168] sm:$0xff]
    %v592 = vld [vmem:[%s2 + $0x170] sm:$0xff]
    %v593 = vld [vmem:[%s2 + $0x178] sm:$0xff]
    %v594 = vld [vmem:[%s2 + $0x180] sm:$0xff]
    %v595 = vld [vmem:[%s2 + $0x188] sm:$0xff]
    %v596 = vld [vmem:[%s2 + $0x190] sm:$0xff]
    %v597 = vld [vmem:[%s2 + $0x198] sm:$0xff]
    %v598 = vld [vmem:[%s2 + $0x1a0] sm:$0xff]
    %v599 = vld [vmem:[%s2 + $0x1a8] sm:$0xff]
    %v600 = vld [vmem:[%s2 + $0x1b0] sm:$0xff]
    %v601 = vld [vmem:[%s2 + $0x1b8] sm:$0xff]
    %v602 = vld [vmem:[%s2 + $0x1c0] sm:$0xff]
    %v603 = vld [vmem:[%s2 + $0x1c8] sm:$0xff]
    %v604 = vld [vmem:[%s2 + $0x1d0] sm:$0xff]
    %v605 = vld [vmem:[%s2 + $0x1d8] sm:$0xff]
    %v606 = vld [vmem:[%s2 + $0x1e0] sm:$0xff]
    %v607 = vld [vmem:[%s2 + $0x1e8] sm:$0xff]
    %v608 = vld [vmem:[%s2 + $0x1f0] sm:$0xff]
    %v609 = vld [vmem:[%s2 + $0x1f8] sm:$0xff]
    %v610 = vld [vmem:[%s2 + $0x200] sm:$0xff]
    %v611 = vld [vmem:[%s2 + $0x208] sm:$0xff]
    %v612 = vld [vmem:[%s2 + $0x210] sm:$0xff]
    %v613 = vld [vmem:[%s2 + $0x218] sm:$0xff]
    %v614 = vld [vmem:[%s2 + $0x220] sm:$0xff]
    %v615 = vld [vmem:[%s2 + $0x228] sm:$0xff]
    %v616 = vld [vmem:[%s2 + $0x230] sm:$0xff]
    %v617 = vld [vmem:[%s2 + $0x238] sm:$0xff]
    %v618 = vld [vmem:[%s2 + $0x240] sm:$0xff]
    %v619 = vld [vmem:[%s2 + $0x248] sm:$0xff]
    %v620 = vld [vmem:[%s2 + $0x250] sm:$0xff]
    %v621 = vld [vmem:[%s2 + $0x258] sm:$0xff]
    %v622 = vld [vmem:[%s2 + $0x260] sm:$0xff]
    %v623 = vld [vmem:[%s2 + $0x268] sm:$0xff]
    %v624 = vld [vmem:[%s2 + $0x270] sm:$0xff]
    %v625 = vld [vmem:[%s2 + $0x278] sm:$0xff]
    %v626 = vld [vmem:[%s2 + $0x280] sm:$0xff]
    %v627 = vld [vmem:[%s2 + $0x288] sm:$0xff]
    %v628 = vld [vmem:[%s2 + $0x290] sm:$0xff]
    %v629 = vld [vmem:[%s2 + $0x298] sm:$0xff]
    %v630 = vld [vmem:[%s2 + $0x2a0] sm:$0xff]
    %v631 = vld [vmem:[%s2 + $0x2a8] sm:$0xff]
    %v632 = vld [vmem:[%s2 + $0x2b0] sm:$0xff]
    %v633 = vld [vmem:[%s2 + $0x2b8] sm:$0xff]
    %v634 = vld [vmem:[%s2 + $0x2c0] sm:$0xff]
    %v635 = vld [vmem:[%s2 + $0x2c8] sm:$0xff]
    %v636 = vld [vmem:[%s2 + $0x2d0] sm:$0xff]
    %v637 = vld [vmem:[%s2 + $0x2d8] sm:$0xff]
    %v638 = vld [vmem:[%s2 + $0x2e0] sm:$0xff]
    %v639 = vld [vmem:[%s2 + $0x2e8] sm:$0xff]
    %v640 = vld [vmem:[%s2 + $0x2f0] sm:$0xff]
    %v641 = vld [vmem:[%s2 + $0x2f8] sm:$0xff]
    %v642 = vld [vmem:[%s2 + $0x300] sm:$0xff]
    %v643 = vld [vmem:[%s2 + $0x308] sm:$0xff]
    %v644 = vld [vmem:[%s2 + $0x310] sm:$0xff]
    %v645 = vld [vmem:[%s2 + $0x318] sm:$0xff]
    %v646 = vld [vmem:[%s2 + $0x320] sm:$0xff]
    %v647 = vld [vmem:[%s2 + $0x328] sm:$0xff]
    %v648 = vld [vmem:[%s2 + $0x330] sm:$0xff]
    %v649 = vld [vmem:[%s2 + $0x338] sm:$0xff]
    %v650 = vld [vmem:[%s2 + $0x340] sm:$0xff]
    %v651 = vld [vmem:[%s2 + $0x348] sm:$0xff]
    %v652 = vld [vmem:[%s2 + $0x350] sm:$0xff]
    %v653 = vld [vmem:[%s2 + $0x358] sm:$0xff]
    %v654 = vld [vmem:[%s2 + $0x360] sm:$0xff]
    %v655 = vld [vmem:[%s2 + $0x368] sm:$0xff]
    %v656 = vld [vmem:[%s2 + $0x370] sm:$0xff]
    %v657 = vld [vmem:[%s2 + $0x378] sm:$0xff]
    %v658 = vld [vmem:[%s2 + $0x380] sm:$0xff]
    %v659 = vld [vmem:[%s2 + $0x388] sm:$0xff]
    %v660 = vld [vmem:[%s2 + $0x390] sm:$0xff]
    %v661 = vld [vmem:[%s2 + $0x398] sm:$0xff]
    %v662 = vld [vmem:[%s2 + $0x3a0] sm:$0xff]
    %v663 = vld [vmem:[%s2 + $0x3a8] sm:$0xff]
    %v664 = vld [vmem:[%s2 + $0x3b0] sm:$0xff]
    %v665 = vld [vmem:[%s2 + $0x3b8] sm:$0xff]
    %v666 = vld [vmem:[%s2 + $0x3c0] sm:$0xff]
    %v667 = vld [vmem:[%s2 + $0x3c8] sm:$0xff]
    %v668 = vld [vmem:[%s2 + $0x3d0] sm:$0xff]
    %v669 = vld [vmem:[%s2 + $0x3d8] sm:$0xff]
    %v670 = vld [vmem:[%s2 + $0x3e0] sm:$0xff]
    %v671 = vld [vmem:[%s2 + $0x3e8] sm:$0xff]
    %v672 = vld [vmem:[%s2 + $0x3f0] sm:$0xff]
    %v673 = vld [vmem:[%s2 + $0x3f8] sm:$0xff]
    %v674 = vld [vmem:[%s2 + $0x400] sm:$0xff]
    %v675 = vld [vmem:[%s2 + $0x408] sm:$0xff]
    %v676 = vld [vmem:[%s2 + $0x410] sm:$0xff]
    %v677 = vld [vmem:[%s2 + $0x418] sm:$0xff]
    %v678 = vld [vmem:[%s2 + $0x420] sm:$0xff]
    %v679 = vld [vmem:[%s2 + $0x428] sm:$0xff]
    %v680 = vld [vmem:[%s2 + $0x430] sm:$0xff]
    %v681 = vld [vmem:[%s2 + $0x438] sm:$0xff]
    %v682 = vld [vmem:[%s2 + $0x440] sm:$0xff]
    %v683 = vld [vmem:[%s2 + $0x448] sm:$0xff]
    %v684 = vld [vmem:[%s2 + $0x450] sm:$0xff]
    %v685 = vld [vmem:[%s2 + $0x458] sm:$0xff]
    %v686 = vld [vmem:[%s2 + $0x460] sm:$0xff]
    %v687 = vld [vmem:[%s2 + $0x468] sm:$0xff]
    %v688 = vld [vmem:[%s2 + $0x470] sm:$0xff]
    %v689 = vld [vmem:[%s2 + $0x478] sm:$0xff]
    %v690 = vld [vmem:[%s2 + $0x480] sm:$0xff]
    %v691 = vld [vmem:[%s2 + $0x488] sm:$0xff]
    %v692 = vld [vmem:[%s2 + $0x490] sm:$0xff]
    %v693 = vld [vmem:[%s2 + $0x498] sm:$0xff]
    %v694 = vld [vmem:[%s2 + $0x4a0] sm:$0xff]
    %v695 = vld [vmem:[%s2 + $0x4a8] sm:$0xff]
    %v696 = vld [vmem:[%s2 + $0x4b0] sm:$0xff]
    %v697 = vld [vmem:[%s2 + $0x4b8] sm:$0xff]
    %v698 = vld [vmem:[%s2 + $0x4c0] sm:$0xff]
    %v699 = vld [vmem:[%s2 + $0x4c8] sm:$0xff]
    %v700 = vld [vmem:[%s2 + $0x4d0] sm:$0xff]
    %v701 = vld [vmem:[%s2 + $0x4d8] sm:$0xff]
    %v702 = vld [vmem:[%s2 + $0x4e0] sm:$0xff]
    %v703 = vld [vmem:[%s2 + $0x4e8] sm:$0xff]
    %v704 = vld [vmem:[%s2 + $0x4f0] sm:$0xff]
    %v705 = vld [vmem:[%s2 + $0x4f8] sm:$0xff]
    %v706 = vld [vmem:[%s2 + $0x500] sm:$0xff]
    %v707 = vld [vmem:[%s2 + $0x508] sm:$0xff]
    %v708 = vld [vmem:[%s2 + $0x510] sm:$0xff]
    %v709 = vld [vmem:[%s2 + $0x518] sm:$0xff]
    %v710 = vld [vmem:[%s2 + $0x520] sm:$0xff]
    %v711 = vld [vmem:[%s2 + $0x528] sm:$0xff]
    %v712 = vld [vmem:[%s2 + $0x530] sm:$0xff]
    %v713 = vld [vmem:[%s2 + $0x538] sm:$0xff]
    %v714 = vld [vmem:[%s2 + $0x540] sm:$0xff]
    %v715 = vld [vmem:[%s2 + $0x548] sm:$0xff]
    %v716 = vld [vmem:[%s2 + $0x550] sm:$0xff]
    %v717 = vld [vmem:[%s2 + $0x558] sm:$0xff]
    %v718 = vld [vmem:[%s2 + $0x560] sm:$0xff]
    %v719 = vld [vmem:[%s2 + $0x568] sm:$0xff]
    %v720 = vld [vmem:[%s2 + $0x570] sm:$0xff]
    %v721 = vld [vmem:[%s2 + $0x578] sm:$0xff]
    %v722 = vld [vmem:[%s2 + $0x580] sm:$0xff]
    %v723 = vld [vmem:[%s2 + $0x588] sm:$0xff]
    %v724 = vld [vmem:[%s2 + $0x590] sm:$0xff]
    %v725 = vld [vmem:[%s2 + $0x598] sm:$0xff]
    %v726 = vld [vmem:[%s2 + $0x5a0] sm:$0xff]
    %v727 = vld [vmem:[%s2 + $0x5a8] sm:$0xff]
    %v728 = vld [vmem:[%s2 + $0x5b0] sm:$0xff]
    %v729 = vld [vmem:[%s2 + $0x5b8] sm:$0xff]
    %v730 = vld [vmem:[%s2 + $0x5c0] sm:$0xff]
    %v731 = vld [vmem:[%s2 + $0x5c8] sm:$0xff]
    %v732 = vld [vmem:[%s2 + $0x5d0] sm:$0xff]
    %v733 = vld [vmem:[%s2 + $0x5d8] sm:$0xff]
    %v734 = vld [vmem:[%s2 + $0x5e0] sm:$0xff]
    %v735 = vld [vmem:[%s2 + $0x5e8] sm:$0xff]
    %v736 = vld [vmem:[%s2 + $0x5f0] sm:$0xff]
    %v737 = vld [vmem:[%s2 + $0x5f8] sm:$0xff]
    %v738 = vld [vmem:[%s2 + $0x600] sm:$0xff]
    %v739 = vld [vmem:[%s2 + $0x608] sm:$0xff]
    %v740 = vld [vmem:[%s2 + $0x610] sm:$0xff]
    %v741 = vld [vmem:[%s2 + $0x618] sm:$0xff]
    %v742 = vld [vmem:[%s2 + $0x620] sm:$0xff]
    %v743 = vld [vmem:[%s2 + $0x628] sm:$0xff]
    %v744 = vld [vmem:[%s2 + $0x630] sm:$0xff]
    %v745 = vld [vmem:[%s2 + $0x638] sm:$0xff]
    %v746 = vld [vmem:[%s2 + $0x640] sm:$0xff]
    %v747 = vld [vmem:[%s2 + $0x648] sm:$0xff]
    %v748 = vld [vmem:[%s2 + $0x650] sm:$0xff]
    %v749 = vld [vmem:[%s2 + $0x658] sm:$0xff]
    %v750 = vld [vmem:[%s2 + $0x660] sm:$0xff]
    %v751 = vld [vmem:[%s2 + $0x668] sm:$0xff]
    %v752 = vld [vmem:[%s2 + $0x670] sm:$0xff]
    %v753 = vld [vmem:[%s2 + $0x678] sm:$0xff]
    %v754 = vld [vmem:[%s2 + $0x680] sm:$0xff]
    %v755 = vld [vmem:[%s2 + $0x688] sm:$0xff]
    %v756 = vld [vmem:[%s2 + $0x690] sm:$0xff]
    %v757 = vld [vmem:[%s2 + $0x698] sm:$0xff]
    %v758 = vld [vmem:[%s2 + $0x6a0] sm:$0xff]
    %v759 = vld [vmem:[%s2 + $0x6a8] sm:$0xff]
    %v760 = vld [vmem:[%s2 + $0x6b0] sm:$0xff]
    %v761 = vld [vmem:[%s2 + $0x6b8] sm:$0xff]
    %v762 = vld [vmem:[%s2 + $0x6c0] sm:$0xff]
    %v763 = vld [vmem:[%s2 + $0x6c8] sm:$0xff]
    %v764 = vld [vmem:[%s2 + $0x6d0] sm:$0xff]
    %v765 = vld [vmem:[%s2 + $0x6d8] sm:$0xff]
    %v766 = vld [vmem:[%s2 + $0x6e0] sm:$0xff]
    %v767 = vld [vmem:[%s2 + $0x6e8] sm:$0xff]
    %v768 = vld [vmem:[%s2 + $0x6f0] sm:$0xff]
    %v769 = vld [vmem:[%s2 + $0x6f8] sm:$0xff]
    %v770 = vld [vmem:[%s2 + $0x700] sm:$0xff]
    %v771 = vld [vmem:[%s2 + $0x708] sm:$0xff]
    %v772 = vld [vmem:[%s2 + $0x710] sm:$0xff]
    %v773 = vld [vmem:[%s2 + $0x718] sm:$0xff]
    %v774 = vld [vmem:[%s2 + $0x720] sm:$0xff]
    %v775 = vld [vmem:[%s2 + $0x728] sm:$0xff]
    %v776 = vld [vmem:[%s2 + $0x730] sm:$0xff]
    %v777 = vld [vmem:[%s2 + $0x738] sm:$0xff]
    %v778 = vld [vmem:[%s2 + $0x740] sm:$0xff]
    %v779 = vld [vmem:[%s2 + $0x748] sm:$0xff]
    %v780 = vld [vmem:[%s2 + $0x750] sm:$0xff]
    %v781 = vld [vmem:[%s2 + $0x758] sm:$0xff]
    %v782 = vld [vmem:[%s2 + $0x760] sm:$0xff]
    %v783 = vld [vmem:[%s2 + $0x768] sm:$0xff]
    %v784 = vld [vmem:[%s2 + $0x770] sm:$0xff]
    %v785 = vld [vmem:[%s2 + $0x778] sm:$0xff]
    %v786 = vld [vmem:[%s2 + $0x780] sm:$0xff]
    %v787 = vld [vmem:[%s2 + $0x788] sm:$0xff]
    %v788 = vld [vmem:[%s2 + $0x790] sm:$0xff]
    %v789 = vld [vmem:[%s2 + $0x798] sm:$0xff]
    %v790 = vld [vmem:[%s2 + $0x7a0] sm:$0xff]
    %v791 = vld [vmem:[%s2 + $0x7a8] sm:$0xff]
    %v792 = vld [vmem:[%s2 + $0x7b0] sm:$0xff]
    %v793 = vld [vmem:[%s2 + $0x7b8] sm:$0xff]
    %v794 = vld [vmem:[%s2 + $0x7c0] sm:$0xff]
    %v795 = vld [vmem:[%s2 + $0x7c8] sm:$0xff]
    %v796 = vld [vmem:[%s2 + $0x7d0] sm:$0xff]
    %v797 = vld [vmem:[%s2 + $0x7d8] sm:$0xff]
    %v798 = vld [vmem:[%s2 + $0x7e0] sm:$0xff]
    %v799 = vld [vmem:[%s2 + $0x7e8] sm:$0xff]
    %v800 = vld [vmem:[%s2 + $0x7f0] sm:$0xff]
    %v801 = vld [vmem:[%s2 + $0x7f8] sm:$0xff]
    %v802 = vld [vmem:[%s2 + $0x800] sm:$0xff]
    %v803 = vld [vmem:[%s2 + $0x808] sm:$0xff]
    %v804 = vld [vmem:[%s2 + $0x810] sm:$0xff]
    %v805 = vld [vmem:[%s2 + $0x818] sm:$0xff]
    %v806 = vld [vmem:[%s2 + $0x820] sm:$0xff]
    %v807 = vld [vmem:[%s2 + $0x828] sm:$0xff]
    %v808 = vld [vmem:[%s2 + $0x830] sm:$0xff]
    %v809 = vld [vmem:[%s2 + $0x838] sm:$0xff]
    %v810 = vld [vmem:[%s2 + $0x840] sm:$0xff]
    %v811 = vld [vmem:[%s2 + $0x848] sm:$0xff]
    %v812 = vld [vmem:[%s2 + $0x850] sm:$0xff]
    %v813 = vld [vmem:[%s2 + $0x858] sm:$0xff]
    %v814 = vld [vmem:[%s2 + $0x860] sm:$0xff]
    %v815 = vld [vmem:[%s2 + $0x868] sm:$0xff]
    %v816 = vld [vmem:[%s2 + $0x870] sm:$0xff]
    %v817 = vld [vmem:[%s2 + $0x878] sm:$0xff]
    %v818 = vld [vmem:[%s2 + $0x880] sm:$0xff]
    %v819 = vld [vmem:[%s2 + $0x888] sm:$0xff]
    %v820 = vld [vmem:[%s2 + $0x890] sm:$0xff]
    %v821 = vld [vmem:[%s2 + $0x898] sm:$0xff]
    %v822 = vld [vmem:[%s2 + $0x8a0] sm:$0xff]
    %v823 = vld [vmem:[%s2 + $0x8a8] sm:$0xff]
    %v824 = vld [vmem:[%s2 + $0x8b0] sm:$0xff]
    %v825 = vld [vmem:[%s2 + $0x8b8] sm:$0xff]
    %v826 = vld [vmem:[%s2 + $0x8c0] sm:$0xff]
    %v827 = vld [vmem:[%s2 + $0x8c8] sm:$0xff]
    %v828 = vld [vmem:[%s2 + $0x8d0] sm:$0xff]
    %v829 = vld [vmem:[%s2 + $0x8d8] sm:$0xff]
    %v830 = vld [vmem:[%s2 + $0x8e0] sm:$0xff]
    %v831 = vld [vmem:[%s2 + $0x8e8] sm:$0xff]
    %v832 = vld [vmem:[%s2 + $0x8f0] sm:$0xff]
    %v833 = vld [vmem:[%s2 + $0x8f8] sm:$0xff]
    %v834 = vld [vmem:[%s2 + $0x900] sm:$0xff]
    %v835 = vld [vmem:[%s2 + $0x908] sm:$0xff]
    %v836 = vld [vmem:[%s2 + $0x910] sm:$0xff]
    %v837 = vld [vmem:[%s2 + $0x918] sm:$0xff]
    %v838 = vld [vmem:[%s2 + $0x920] sm:$0xff]
    %v839 = vld [vmem:[%s2 + $0x928] sm:$0xff]
    %v840 = vld [vmem:[%s2 + $0x930] sm:$0xff]
    %v841 = vld [vmem:[%s2 + $0x938] sm:$0xff]
    %v842 = vld [vmem:[%s2 + $0x940] sm:$0xff]
    %v843 = vld [vmem:[%s2 + $0x948] sm:$0xff]
    %v844 = vld [vmem:[%s2 + $0x950] sm:$0xff]
    %v845 = vld [vmem:[%s2 + $0x958] sm:$0xff]
    %v846 = vld [vmem:[%s2 + $0x960] sm:$0xff]
    %v847 = vld [vmem:[%s2 + $0x968] sm:$0xff]
    %v848 = vld [vmem:[%s2 + $0x970] sm:$0xff]
    %v849 = vld [vmem:[%s2 + $0x978] sm:$0xff]
    %v850 = vld [vmem:[%s2 + $0x980] sm:$0xff]
    %v851 = vld [vmem:[%s2 + $0x988] sm:$0xff]
    %v852 = vld [vmem:[%s2 + $0x990] sm:$0xff]
    %v853 = vld [vmem:[%s2 + $0x998] sm:$0xff]
    %v854 = vld [vmem:[%s2 + $0x9a0] sm:$0xff]
    %v855 = vld [vmem:[%s2 + $0x9a8] sm:$0xff]
    %v856 = vld [vmem:[%s2 + $0x9b0] sm:$0xff]
    %v857 = vld [vmem:[%s2 + $0x9b8] sm:$0xff]
    %v858 = vld [vmem:[%s2 + $0x9c0] sm:$0xff]
    %v859 = vld [vmem:[%s2 + $0x9c8] sm:$0xff]
    %v860 = vld [vmem:[%s2 + $0x9d0] sm:$0xff]
    %v861 = vld [vmem:[%s2 + $0x9d8] sm:$0xff]
    %v862 = vld [vmem:[%s2 + $0x9e0] sm:$0xff]
    %v863 = vld [vmem:[%s2 + $0x9e8] sm:$0xff]
    %v864 = vld [vmem:[%s2 + $0x9f0] sm:$0xff]
    %v865 = vld [vmem:[%s2 + $0x9f8] sm:$0xff]
    %v866 = vld [vmem:[%s2 + $0xa00] sm:$0xff]
    %v867 = vld [vmem:[%s2 + $0xa08] sm:$0xff]
    %v868 = vld [vmem:[%s2 + $0xa10] sm:$0xff]
    %v869 = vld [vmem:[%s2 + $0xa18] sm:$0xff]
    %v870 = vld [vmem:[%s2 + $0xa20] sm:$0xff]
    %v871 = vld [vmem:[%s2 + $0xa28] sm:$0xff]
    %v872 = vld [vmem:[%s2 + $0xa30] sm:$0xff]
    %v873 = vld [vmem:[%s2 + $0xa38] sm:$0xff]
    %v874 = vld [vmem:[%s2 + $0xa40] sm:$0xff]
    %v875 = vld [vmem:[%s2 + $0xa48] sm:$0xff]
    %v876 = vld [vmem:[%s2 + $0xa50] sm:$0xff]
    %v877 = vld [vmem:[%s2 + $0xa58] sm:$0xff]
    %v878 = vld [vmem:[%s2 + $0xa60] sm:$0xff]
    %v879 = vld [vmem:[%s2 + $0xa68] sm:$0xff]
    %v880 = vld [vmem:[%s2 + $0xa70] sm:$0xff]
    %v881 = vld [vmem:[%s2 + $0xa78] sm:$0xff]
    %v882 = vld [vmem:[%s2 + $0xa80] sm:$0xff]
    %v883 = vld [vmem:[%s2 + $0xa88] sm:$0xff]
    %v884 = vld [vmem:[%s2 + $0xa90] sm:$0xff]
    %v885 = vld [vmem:[%s2 + $0xa98] sm:$0xff]
    %v886 = vld [vmem:[%s2 + $0xaa0] sm:$0xff]
    %v887 = vld [vmem:[%s2 + $0xaa8] sm:$0xff]
    %v888 = vld [vmem:[%s2 + $0xab0] sm:$0xff]
    %v889 = vld [vmem:[%s2 + $0xab8] sm:$0xff]
    %v890 = vld [vmem:[%s2 + $0xac0] sm:$0xff]
    %v891 = vld [vmem:[%s2 + $0xac8] sm:$0xff]
    %v892 = vld [vmem:[%s2 + $0xad0] sm:$0xff]
    %v893 = vld [vmem:[%s2 + $0xad8] sm:$0xff]
    %v894 = vld [vmem:[%s2 + $0xae0] sm:$0xff]
    %v895 = vld [vmem:[%s2 + $0xae8] sm:$0xff]
    %v896 = vld [vmem:[%s2 + $0xaf0] sm:$0xff]
    %v897 = vld [vmem:[%s2 + $0xaf8] sm:$0xff]
    %v898 = vld [vmem:[%s2 + $0xb00] sm:$0xff]
    %v899 = vld [vmem:[%s2 + $0xb08] sm:$0xff]
    %v900 = vld [vmem:[%s2 + $0xb10] sm:$0xff]
    %v901 = vld [vmem:[%s2 + $0xb18] sm:$0xff]
    %v902 = vld [vmem:[%s2 + $0xb20] sm:$0xff]
    %v903 = vld [vmem:[%s2 + $0xb28] sm:$0xff]
    %v904 = vld [vmem:[%s2 + $0xb30] sm:$0xff]
    %v905 = vld [vmem:[%s2 + $0xb38] sm:$0xff]
    %v906 = vld [vmem:[%s2 + $0xb40] sm:$0xff]
    %v907 = vld [vmem:[%s2 + $0xb48] sm:$0xff]
    %v908 = vld [vmem:[%s2 + $0xb50] sm:$0xff]
    %v909 = vld [vmem:[%s2 + $0xb58] sm:$0xff]
    %v910 = vld [vmem:[%s2 + $0xb60] sm:$0xff]
    %v911 = vld [vmem:[%s2 + $0xb68] sm:$0xff]
    %v912 = vld [vmem:[%s2 + $0xb70] sm:$0xff]
    %v913 = vld [vmem:[%s2 + $0xb78] sm:$0xff]
    %v914 = vld [vmem:[%s2 + $0xb80] sm:$0xff]
    %v915 = vld [vmem:[%s2 + $0xb88] sm:$0xff]
    %v916 = vld [vmem:[%s2 + $0xb90] sm:$0xff]
    %v917 = vld [vmem:[%s2 + $0xb98] sm:$0xff]
    %v918 = vld [vmem:[%s2 + $0xba0] sm:$0xff]
    %v919 = vld [vmem:[%s2 + $0xba8] sm:$0xff]
    %v920 = vld [vmem:[%s2 + $0xbb0] sm:$0xff]
    %v921 = vld [vmem:[%s2 + $0xbb8] sm:$0xff]
    %v922 = vld [vmem:[%s2 + $0xbc0] sm:$0xff]
    %v923 = vld [vmem:[%s2 + $0xbc8] sm:$0xff]
    %v924 = vld [vmem:[%s2 + $0xbd0] sm:$0xff]
    %v925 = vld [vmem:[%s2 + $0xbd8] sm:$0xff]
    %v926 = vld [vmem:[%s2 + $0xbe0] sm:$0xff]
    %v927 = vld [vmem:[%s2 + $0xbe8] sm:$0xff]
    %v928 = vld [vmem:[%s2 + $0xbf0] sm:$0xff]
    %v929 = vld [vmem:[%s2 + $0xbf8] sm:$0xff]
    %930 = vmatprep.subr.mxu0 %v607
    %931 = vmatpush1.msra.mxu0 %v606
    %932 = vmatprep.subr.mxu0 %v603
    %933 = vmatpush1.msra.mxu0 %v602
    %934 = vmatprep.subr.mxu0 %v599
    %935 = vmatpush1.msra.mxu0 %v598
    %936 = vmatprep.subr.mxu0 %v595
    %937 = vmatpush1.msra.mxu0 %v594
    %938 = vmatprep.subr.mxu0 %v591
    %939 = vmatpush1.msra.mxu0 %v590
    %940 = vmatprep.subr.mxu0 %v587
    %941 = vmatpush1.msra.mxu0 %v586
    %942 = vmatprep.subr.mxu0 %v583
    %943 = vmatpush1.msra.mxu0 %v582
    %944 = vmatprep.subr.mxu0 %v579
    %945 = vmatpush1.msra.mxu0 %v578
    %946 = vmatprep.subr.mxu0 %v575
    %947 = vmatpush1.msra.mxu0 %v574
    %948 = vmatprep.subr.mxu0 %v571
    %949 = vmatpush1.msra.mxu0 %v570
    %950 = vmatprep.subr.mxu0 %v567
    %951 = vmatpush1.msra.mxu0 %v566
    %952 = vmatprep.subr.mxu0 %v563
    %953 = vmatpush1.msra.mxu0 %v562
    %954 = vmatprep.subr.mxu0 %v559
    %955 = vmatpush1.msra.mxu0 %v558
    %956 = vmatprep.subr.mxu0 %v555
    %957 = vmatpush1.msra.mxu0 %v554
    %958 = vmatprep.subr.mxu0 %v551
    %959 = vmatpush1.msra.mxu0 %v550
    %960 = vmatprep.subr.mxu0 %v547
    %961 = vmatpush1.msra.mxu0 %v546
    %962 = vmatprep.subr.mxu0 %v671
    %963 = vmatpush2.msra.mxu0 %v670
    %964 = vmatprep.subr.mxu0 %v667
    %965 = vmatpush2.msra.mxu0 %v666
    %966 = vmatprep.subr.mxu0 %v663
    %967 = vmatpush2.msra.mxu0 %v662
    %968 = vmatprep.subr.mxu0 %v659
    %969 = vmatpush2.msra.mxu0 %v658
    %970 = vmatprep.subr.mxu0 %v655
    %971 = vmatpush2.msra.mxu0 %v654
    %972 = vmatprep.subr.mxu0 %v651
    %973 = vmatpush2.msra.mxu0 %v650
    %974 = vmatprep.subr.mxu0 %v647
    %975 = vmatpush2.msra.mxu0 %v646
    %976 = vmatprep.subr.mxu0 %v643
    %977 = vmatpush2.msra.mxu0 %v642
    %978 = vmatprep.subr.mxu0 %v639
    %979 = vmatpush2.msra.mxu0 %v638
    %980 = vmatprep.subr.mxu0 %v635
    %981 = vmatpush2.msra.mxu0 %v634
    %982 = vmatprep.subr.mxu0 %v631
    %983 = vmatpush2.msra.mxu0 %v630
    %984 = vmatprep.subr.mxu0 %v627
    %985 = vmatpush2.msra.mxu0 %v626
    %986 = vmatprep.subr.mxu0 %v623
    %987 = vmatpush2.msra.mxu0 %v622
    %988 = vmatprep.subr.mxu0 %v619
    %989 = vmatpush2.msra.mxu0 %v618
    %990 = vmatprep.subr.mxu0 %v615
    %991 = vmatpush2.msra.mxu0 %v614
    %992 = vmatprep.subr.mxu0 %v611
    %993 = vmatpush2.msra.mxu0 %v610
    %994 = vmatprep.mubr.f32.mxu0 %v540
    %995 = vmatmul.mubr.f32.gmra.mxu0 %v534
    %v996 = vpop.f32.mrf.mxu0
    %v997 = vadd.f32 0.0, %v996
    %v998 = vpop.f32.mrf.mxu0
    %v999 = vadd.f32 0.0, %v998
    %1000 = vmatprep.mubr.f32.mxu0 %v541
    %1001 = vmatmul.mubr.f32.gmra.mxu0 %v535
    %v1002 = vpop.f32.mrf.mxu0
    %v1003 = vadd.f32 0.0, %v1002
    %v1004 = vpop.f32.mrf.mxu0
    %v1005 = vadd.f32 0.0, %v1004
    %1006 = vmatprep.mubr.f32.mxu0 %v542
    %1007 = vmatmul.mubr.f32.gmra.mxu0 %v536
    %v1008 = vpop.f32.mrf.mxu0
    %v1009 = vadd.f32 0.0, %v1008
    %v1010 = vpop.f32.mrf.mxu0
    %v1011 = vadd.f32 0.0, %v1010
    %1012 = vmatprep.mubr.f32.mxu0 %v543
    %1013 = vmatmul.mubr.f32.gmra.mxu0 %v537
    %v1014 = vpop.f32.mrf.mxu0
    %v1015 = vadd.f32 0.0, %v1014
    %v1016 = vpop.f32.mrf.mxu0
    %v1017 = vadd.f32 0.0, %v1016
    %1018 = vdwg.mxu0
    %1019 = vmatprep.subr.mxu0 %v735
    %1020 = vmatpush1.msra.mxu0 %v734
    %1021 = vmatprep.subr.mxu0 %v731
    %1022 = vmatpush1.msra.mxu0 %v730
    %1023 = vmatprep.subr.mxu0 %v727
    %1024 = vmatpush1.msra.mxu0 %v726
    %1025 = vmatprep.subr.mxu0 %v723
    %1026 = vmatpush1.msra.mxu0 %v722
    %1027 = vmatprep.subr.mxu0 %v719
    %1028 = vmatpush1.msra.mxu0 %v718
    %1029 = vmatprep.subr.mxu0 %v715
    %1030 = vmatpush1.msra.mxu0 %v714
    %1031 = vmatprep.subr.mxu0 %v711
    %1032 = vmatpush1.msra.mxu0 %v710
    %1033 = vmatprep.subr.mxu0 %v707
    %1034 = vmatpush1.msra.mxu0 %v706
    %1035 = vmatprep.subr.mxu0 %v703
    %1036 = vmatpush1.msra.mxu0 %v702
    %1037 = vmatprep.subr.mxu0 %v699
    %1038 = vmatpush1.msra.mxu0 %v698
    %1039 = vmatprep.subr.mxu0 %v695
    %1040 = vmatpush1.msra.mxu0 %v694
    %1041 = vmatprep.subr.mxu0 %v691
    %1042 = vmatpush1.msra.mxu0 %v690
    %1043 = vmatprep.subr.mxu0 %v687
    %1044 = vmatpush1.msra.mxu0 %v686
    %1045 = vmatprep.subr.mxu0 %v683
    %1046 = vmatpush1.msra.mxu0 %v682
    %1047 = vmatprep.subr.mxu0 %v679
    %1048 = vmatpush1.msra.mxu0 %v678
    %1049 = vmatprep.subr.mxu0 %v675
    %1050 = vmatpush1.msra.mxu0 %v674
    %1051 = vmatprep.subr.mxu0 %v799
    %1052 = vmatpush2.msra.mxu0 %v798
    %1053 = vmatprep.subr.mxu0 %v795
    %1054 = vmatpush2.msra.mxu0 %v794
    %1055 = vmatprep.subr.mxu0 %v791
    %1056 = vmatpush2.msra.mxu0 %v790
    %1057 = vmatprep.subr.mxu0 %v787
    %1058 = vmatpush2.msra.mxu0 %v786
    %1059 = vmatprep.subr.mxu0 %v783
    %1060 = vmatpush2.msra.mxu0 %v782
    %1061 = vmatprep.subr.mxu0 %v779
    %1062 = vmatpush2.msra.mxu0 %v778
    %1063 = vmatprep.subr.mxu0 %v775
    %1064 = vmatpush2.msra.mxu0 %v774
    %1065 = vmatprep.subr.mxu0 %v771
    %1066 = vmatpush2.msra.mxu0 %v770
    %1067 = vmatprep.subr.mxu0 %v767
    %1068 = vmatpush2.msra.mxu0 %v766
    %1069 = vmatprep.subr.mxu0 %v763
    %1070 = vmatpush2.msra.mxu0 %v762
    %1071 = vmatprep.subr.mxu0 %v759
    %1072 = vmatpush2.msra.mxu0 %v758
    %1073 = vmatprep.subr.mxu0 %v755
    %1074 = vmatpush2.msra.mxu0 %v754
    %1075 = vmatprep.subr.mxu0 %v751
    %1076 = vmatpush2.msra.mxu0 %v750
    %1077 = vmatprep.subr.mxu0 %v747
    %1078 = vmatpush2.msra.mxu0 %v746
    %1079 = vmatprep.subr.mxu0 %v743
    %1080 = vmatpush2.msra.mxu0 %v742
    %1081 = vmatprep.subr.mxu0 %v739
    %1082 = vmatpush2.msra.mxu0 %v738
    %1083 = vmatprep.mubr.f32.mxu0 %v541
    %1084 = vmatmul.mubr.f32.gmra.mxu0 %v535
    %v1085 = vpop.f32.mrf.mxu0
    %v1086 = vadd.f32 %v997, %v1085
    %v1087 = vpop.f32.mrf.mxu0
    %v1088 = vadd.f32 %v999, %v1087
    %1089 = vmatprep.mubr.f32.mxu0 %v542
    %1090 = vmatmul.mubr.f32.gmra.mxu0 %v536
    %v1091 = vpop.f32.mrf.mxu0
    %v1092 = vadd.f32 %v1003, %v1091
    %v1093 = vpop.f32.mrf.mxu0
    %v1094 = vadd.f32 %v1005, %v1093
    %1095 = vmatprep.mubr.f32.mxu0 %v543
    %1096 = vmatmul.mubr.f32.gmra.mxu0 %v537
    %v1097 = vpop.f32.mrf.mxu0
    %v1098 = vadd.f32 %v1009, %v1097
    %v1099 = vpop.f32.mrf.mxu0
    %v1100 = vadd.f32 %v1011, %v1099
    %1101 = vmatprep.mubr.f32.mxu0 %v544
    %1102 = vmatmul.mubr.f32.gmra.mxu0 %v538
    %v1103 = vpop.f32.mrf.mxu0
    %v1104 = vadd.f32 %v1015, %v1103
    %v1105 = vpop.f32.mrf.mxu0
    %v1106 = vadd.f32 %v1017, %v1105
    %1107 = vdwg.mxu0
    %1108 = vmatprep.subr.mxu0 %v863
    %1109 = vmatpush1.msra.mxu0 %v862
    %1110 = vmatprep.subr.mxu0 %v859
    %1111 = vmatpush1.msra.mxu0 %v858
    %1112 = vmatprep.subr.mxu0 %v855
    %1113 = vmatpush1.msra.mxu0 %v854
    %1114 = vmatprep.subr.mxu0 %v851
    %1115 = vmatpush1.msra.mxu0 %v850
    %1116 = vmatprep.subr.mxu0 %v847
    %1117 = vmatpush1.msra.mxu0 %v846
    %1118 = vmatprep.subr.mxu0 %v843
    %1119 = vmatpush1.msra.mxu0 %v842
    %1120 = vmatprep.subr.mxu0 %v839
    %1121 = vmatpush1.msra.mxu0 %v838
    %1122 = vmatprep.subr.mxu0 %v835
    %1123 = vmatpush1.msra.mxu0 %v834
    %1124 = vmatprep.subr.mxu0 %v831
    %1125 = vmatpush1.msra.mxu0 %v830
    %1126 = vmatprep.subr.mxu0 %v827
    %1127 = vmatpush1.msra.mxu0 %v826
    %1128 = vmatprep.subr.mxu0 %v823
    %1129 = vmatpush1.msra.mxu0 %v822
    %1130 = vmatprep.subr.mxu0 %v819
    %1131 = vmatpush1.msra.mxu0 %v818
    %1132 = vmatprep.subr.mxu0 %v815
    %1133 = vmatpush1.msra.mxu0 %v814
    %1134 = vmatprep.subr.mxu0 %v811
    %1135 = vmatpush1.msra.mxu0 %v810
    %1136 = vmatprep.subr.mxu0 %v807
    %1137 = vmatpush1.msra.mxu0 %v806
    %1138 = vmatprep.subr.mxu0 %v803
    %1139 = vmatpush1.msra.mxu0 %v802
    %1140 = vmatprep.subr.mxu0 %v927
    %1141 = vmatpush2.msra.mxu0 %v926
    %1142 = vmatprep.subr.mxu0 %v923
    %1143 = vmatpush2.msra.mxu0 %v922
    %1144 = vmatprep.subr.mxu0 %v919
    %1145 = vmatpush2.msra.mxu0 %v918
    %1146 = vmatprep.subr.mxu0 %v915
    %1147 = vmatpush2.msra.mxu0 %v914
    %1148 = vmatprep.subr.mxu0 %v911
    %1149 = vmatpush2.msra.mxu0 %v910
    %1150 = vmatprep.subr.mxu0 %v907
    %1151 = vmatpush2.msra.mxu0 %v906
    %1152 = vmatprep.subr.mxu0 %v903
    %1153 = vmatpush2.msra.mxu0 %v902
    %1154 = vmatprep.subr.mxu0 %v899
    %1155 = vmatpush2.msra.mxu0 %v898
    %1156 = vmatprep.subr.mxu0 %v895
    %1157 = vmatpush2.msra.mxu0 %v894
    %1158 = vmatprep.subr.mxu0 %v891
    %1159 = vmatpush2.msra.mxu0 %v890
    %1160 = vmatprep.subr.mxu0 %v887
    %1161 = vmatpush2.msra.mxu0 %v886
    %1162 = vmatprep.subr.mxu0 %v883
    %1163 = vmatpush2.msra.mxu0 %v882
    %1164 = vmatprep.subr.mxu0 %v879
    %1165 = vmatpush2.msra.mxu0 %v878
    %1166 = vmatprep.subr.mxu0 %v875
    %1167 = vmatpush2.msra.mxu0 %v874
    %1168 = vmatprep.subr.mxu0 %v871
    %1169 = vmatpush2.msra.mxu0 %v870
    %1170 = vmatprep.subr.mxu0 %v867
    %1171 = vmatpush2.msra.mxu0 %v866
    %1172 = vmatprep.mubr.f32.mxu0 %v542
    %1173 = vmatmul.mubr.f32.gmra.mxu0 %v536
    %v1174 = vpop.f32.mrf.mxu0
    %v1175 = vadd.f32 %v1086, %v1174
    %v1176 = vpop.f32.mrf.mxu0
    %v1177 = vadd.f32 %v1088, %v1176
    %1178 = vmatprep.mubr.f32.mxu0 %v543
    %1179 = vmatmul.mubr.f32.gmra.mxu0 %v537
    %v1180 = vpop.f32.mrf.mxu0
    %v1181 = vadd.f32 %v1092, %v1180
    %v1182 = vpop.f32.mrf.mxu0
    %v1183 = vadd.f32 %v1094, %v1182
    %1184 = vmatprep.mubr.f32.mxu0 %v544
    %1185 = vmatmul.mubr.f32.gmra.mxu0 %v538
    %v1186 = vpop.f32.mrf.mxu0
    %v1187 = vadd.f32 %v1098, %v1186
    %v1188 = vpop.f32.mrf.mxu0
    %v1189 = vadd.f32 %v1100, %v1188
    %1190 = vmatprep.mubr.f32.mxu0 %v545
    %1191 = vmatmul.mubr.f32.gmra.mxu0 %v539
    %v1192 = vpop.f32.mrf.mxu0
    %v1193 = vadd.f32 %v1104, %v1192
    %v1194 = vpop.f32.mrf.mxu0
    %v1195 = vadd.f32 %v1106, %v1194
    %1196 = vdwg.mxu0
    %1197 = vmatprep.subr.mxu0 %v609
    %1198 = vmatpush1.msra.mxu0 %v608
    %1199 = vmatprep.subr.mxu0 %v605
    %1200 = vmatpush1.msra.mxu0 %v604
    %1201 = vmatprep.subr.mxu0 %v601
    %1202 = vmatpush1.msra.mxu0 %v600
    %1203 = vmatprep.subr.mxu0 %v597
    %1204 = vmatpush1.msra.mxu0 %v596
    %1205 = vmatprep.subr.mxu0 %v593
    %1206 = vmatpush1.msra.mxu0 %v592
    %1207 = vmatprep.subr.mxu0 %v589
    %1208 = vmatpush1.msra.mxu0 %v588
    %1209 = vmatprep.subr.mxu0 %v585
    %1210 = vmatpush1.msra.mxu0 %v584
    %1211 = vmatprep.subr.mxu0 %v581
    %1212 = vmatpush1.msra.mxu0 %v580
    %1213 = vmatprep.subr.mxu0 %v577
    %1214 = vmatpush1.msra.mxu0 %v576
    %1215 = vmatprep.subr.mxu0 %v573
    %1216 = vmatpush1.msra.mxu0 %v572
    %1217 = vmatprep.subr.mxu0 %v569
    %1218 = vmatpush1.msra.mxu0 %v568
    %1219 = vmatprep.subr.mxu0 %v565
    %1220 = vmatpush1.msra.mxu0 %v564
    %1221 = vmatprep.subr.mxu0 %v561
    %1222 = vmatpush1.msra.mxu0 %v560
    %1223 = vmatprep.subr.mxu0 %v557
    %1224 = vmatpush1.msra.mxu0 %v556
    %1225 = vmatprep.subr.mxu0 %v553
    %1226 = vmatpush1.msra.mxu0 %v552
    %1227 = vmatprep.subr.mxu0 %v549
    %1228 = vmatpush1.msra.mxu0 %v548
    %1229 = vmatprep.subr.mxu0 %v673
    %1230 = vmatpush2.msra.mxu0 %v672
    %1231 = vmatprep.subr.mxu0 %v669
    %1232 = vmatpush2.msra.mxu0 %v668
    %1233 = vmatprep.subr.mxu0 %v665
    %1234 = vmatpush2.msra.mxu0 %v664
    %1235 = vmatprep.subr.mxu0 %v661
    %1236 = vmatpush2.msra.mxu0 %v660
    %1237 = vmatprep.subr.mxu0 %v657
    %1238 = vmatpush2.msra.mxu0 %v656
    %1239 = vmatprep.subr.mxu0 %v653
    %1240 = vmatpush2.msra.mxu0 %v652
    %1241 = vmatprep.subr.mxu0 %v649
    %1242 = vmatpush2.msra.mxu0 %v648
    %1243 = vmatprep.subr.mxu0 %v645
    %1244 = vmatpush2.msra.mxu0 %v644
    %1245 = vmatprep.subr.mxu0 %v641
    %1246 = vmatpush2.msra.mxu0 %v640
    %1247 = vmatprep.subr.mxu0 %v637
    %1248 = vmatpush2.msra.mxu0 %v636
    %1249 = vmatprep.subr.mxu0 %v633
    %1250 = vmatpush2.msra.mxu0 %v632
    %1251 = vmatprep.subr.mxu0 %v629
    %1252 = vmatpush2.msra.mxu0 %v628
    %1253 = vmatprep.subr.mxu0 %v625
    %1254 = vmatpush2.msra.mxu0 %v624
    %1255 = vmatprep.subr.mxu0 %v621
    %1256 = vmatpush2.msra.mxu0 %v620
    %1257 = vmatprep.subr.mxu0 %v617
    %1258 = vmatpush2.msra.mxu0 %v616
    %1259 = vmatprep.subr.mxu0 %v613
    %1260 = vmatpush2.msra.mxu0 %v612
    %1261 = vmatprep.mubr.f32.mxu0 %v540
    %1262 = vmatmul.mubr.f32.gmra.mxu0 %v534
    %v1263 = vpop.f32.mrf.mxu0
    %v1264 = vadd.f32 0.0, %v1263
    %v1265 = vpop.f32.mrf.mxu0
    %v1266 = vadd.f32 0.0, %v1265
    %1267 = vmatprep.mubr.f32.mxu0 %v541
    %1268 = vmatmul.mubr.f32.gmra.mxu0 %v535
    %v1269 = vpop.f32.mrf.mxu0
    %v1270 = vadd.f32 0.0, %v1269
    %v1271 = vpop.f32.mrf.mxu0
    %v1272 = vadd.f32 0.0, %v1271
    %1273 = vmatprep.mubr.f32.mxu0 %v542
    %1274 = vmatmul.mubr.f32.gmra.mxu0 %v536
    %v1275 = vpop.f32.mrf.mxu0
    %v1276 = vadd.f32 0.0, %v1275
    %v1277 = vpop.f32.mrf.mxu0
    %v1278 = vadd.f32 0.0, %v1277
    %1279 = vmatprep.mubr.f32.mxu0 %v543
    %1280 = vmatmul.mubr.f32.gmra.mxu0 %v537
    %v1281 = vpop.f32.mrf.mxu0
    %v1282 = vadd.f32 0.0, %v1281
    %v1283 = vpop.f32.mrf.mxu0
    %v1284 = vadd.f32 0.0, %v1283
    %1285 = vdwg.mxu0
    %1286 = vmatprep.subr.mxu0 %v737
    %1287 = vmatpush1.msra.mxu0 %v736
    %1288 = vmatprep.subr.mxu0 %v733
    %1289 = vmatpush1.msra.mxu0 %v732
    %1290 = vmatprep.subr.mxu0 %v729
    %1291 = vmatpush1.msra.mxu0 %v728
    %1292 = vmatprep.subr.mxu0 %v725
    %1293 = vmatpush1.msra.mxu0 %v724
    %1294 = vmatprep.subr.mxu0 %v721
    %1295 = vmatpush1.msra.mxu0 %v720
    %1296 = vmatprep.subr.mxu0 %v717
    %1297 = vmatpush1.msra.mxu0 %v716
    %1298 = vmatprep.subr.mxu0 %v713
    %1299 = vmatpush1.msra.mxu0 %v712
    %1300 = vmatprep.subr.mxu0 %v709
    %1301 = vmatpush1.msra.mxu0 %v708
    %1302 = vmatprep.subr.mxu0 %v705
    %1303 = vmatpush1.msra.mxu0 %v704
    %1304 = vmatprep.subr.mxu0 %v701
    %1305 = vmatpush1.msra.mxu0 %v700
    %1306 = vmatprep.subr.mxu0 %v697
    %1307 = vmatpush1.msra.mxu0 %v696
    %1308 = vmatprep.subr.mxu0 %v693
    %1309 = vmatpush1.msra.mxu0 %v692
    %1310 = vmatprep.subr.mxu0 %v689
    %1311 = vmatpush1.msra.mxu0 %v688
    %1312 = vmatprep.subr.mxu0 %v685
    %1313 = vmatpush1.msra.mxu0 %v684
    %1314 = vmatprep.subr.mxu0 %v681
    %1315 = vmatpush1.msra.mxu0 %v680
    %1316 = vmatprep.subr.mxu0 %v677
    %1317 = vmatpush1.msra.mxu0 %v676
    %1318 = vmatprep.subr.mxu0 %v801
    %1319 = vmatpush2.msra.mxu0 %v800
    %1320 = vmatprep.subr.mxu0 %v797
    %1321 = vmatpush2.msra.mxu0 %v796
    %1322 = vmatprep.subr.mxu0 %v793
    %1323 = vmatpush2.msra.mxu0 %v792
    %1324 = vmatprep.subr.mxu0 %v789
    %1325 = vmatpush2.msra.mxu0 %v788
    %1326 = vmatprep.subr.mxu0 %v785
    %1327 = vmatpush2.msra.mxu0 %v784
    %1328 = vmatprep.subr.mxu0 %v781
    %1329 = vmatpush2.msra.mxu0 %v780
    %1330 = vmatprep.subr.mxu0 %v777
    %1331 = vmatpush2.msra.mxu0 %v776
    %1332 = vmatprep.subr.mxu0 %v773
    %1333 = vmatpush2.msra.mxu0 %v772
    %1334 = vmatprep.subr.mxu0 %v769
    %1335 = vmatpush2.msra.mxu0 %v768
    %1336 = vmatprep.subr.mxu0 %v765
    %1337 = vmatpush2.msra.mxu0 %v764
    %1338 = vmatprep.subr.mxu0 %v761
    %1339 = vmatpush2.msra.mxu0 %v760
    %1340 = vmatprep.subr.mxu0 %v757
    %1341 = vmatpush2.msra.mxu0 %v756
    %1342 = vmatprep.subr.mxu0 %v753
    %1343 = vmatpush2.msra.mxu0 %v752
    %1344 = vmatprep.subr.mxu0 %v749
    %1345 = vmatpush2.msra.mxu0 %v748
    %1346 = vmatprep.subr.mxu0 %v745
    %1347 = vmatpush2.msra.mxu0 %v744
    %1348 = vmatprep.subr.mxu0 %v741
    %1349 = vmatpush2.msra.mxu0 %v740
    %1350 = vmatprep.mubr.f32.mxu0 %v541
    %1351 = vmatmul.mubr.f32.gmra.mxu0 %v535
    %v1352 = vpop.f32.mrf.mxu0
    %v1353 = vadd.f32 %v1264, %v1352
    %v1354 = vpop.f32.mrf.mxu0
    %v1355 = vadd.f32 %v1266, %v1354
    %1356 = vmatprep.mubr.f32.mxu0 %v542
    %1357 = vmatmul.mubr.f32.gmra.mxu0 %v536
    %v1358 = vpop.f32.mrf.mxu0
    %v1359 = vadd.f32 %v1270, %v1358
    %v1360 = vpop.f32.mrf.mxu0
    %v1361 = vadd.f32 %v1272, %v1360
    %1362 = vmatprep.mubr.f32.mxu0 %v543
    %1363 = vmatmul.mubr.f32.gmra.mxu0 %v537
    %v1364 = vpop.f32.mrf.mxu0
    %v1365 = vadd.f32 %v1276, %v1364
    %v1366 = vpop.f32.mrf.mxu0
    %v1367 = vadd.f32 %v1278, %v1366
    %1368 = vmatprep.mubr.f32.mxu0 %v544
    %1369 = vmatmul.mubr.f32.gmra.mxu0 %v538
    %v1370 = vpop.f32.mrf.mxu0
    %v1371 = vadd.f32 %v1282, %v1370
    %v1372 = vpop.f32.mrf.mxu0
    %v1373 = vadd.f32 %v1284, %v1372
    %1374 = vdwg.mxu0
    %1375 = vmatprep.subr.mxu0 %v865
    %1376 = vmatpush1.msra.mxu0 %v864
    %1377 = vmatprep.subr.mxu0 %v861
    %1378 = vmatpush1.msra.mxu0 %v860
    %1379 = vmatprep.subr.mxu0 %v857
    %1380 = vmatpush1.msra.mxu0 %v856
    %1381 = vmatprep.subr.mxu0 %v853
    %1382 = vmatpush1.msra.mxu0 %v852
    %1383 = vmatprep.subr.mxu0 %v849
    %1384 = vmatpush1.msra.mxu0 %v848
    %1385 = vmatprep.subr.mxu0 %v845
    %1386 = vmatpush1.msra.mxu0 %v844
    %1387 = vmatprep.subr.mxu0 %v841
    %1388 = vmatpush1.msra.mxu0 %v840
    %1389 = vmatprep.subr.mxu0 %v837
    %1390 = vmatpush1.msra.mxu0 %v836
    %1391 = vmatprep.subr.mxu0 %v833
    %1392 = vmatpush1.msra.mxu0 %v832
    %1393 = vmatprep.subr.mxu0 %v829
    %1394 = vmatpush1.msra.mxu0 %v828
    %1395 = vmatprep.subr.mxu0 %v825
    %1396 = vmatpush1.msra.mxu0 %v824
    %1397 = vmatprep.subr.mxu0 %v821
    %1398 = vmatpush1.msra.mxu0 %v820
    %1399 = vmatprep.subr.mxu0 %v817
    %1400 = vmatpush1.msra.mxu0 %v816
    %1401 = vmatprep.subr.mxu0 %v813
    %1402 = vmatpush1.msra.mxu0 %v812
    %1403 = vmatprep.subr.mxu0 %v809
    %1404 = vmatpush1.msra.mxu0 %v808
    %1405 = vmatprep.subr.mxu0 %v805
    %1406 = vmatpush1.msra.mxu0 %v804
    %1407 = vmatprep.subr.mxu0 %v929
    %1408 = vmatpush2.msra.mxu0 %v928
    %1409 = vmatprep.subr.mxu0 %v925
    %1410 = vmatpush2.msra.mxu0 %v924
    %1411 = vmatprep.subr.mxu0 %v921
    %1412 = vmatpush2.msra.mxu0 %v920
    %1413 = vmatprep.subr.mxu0 %v917
    %1414 = vmatpush2.msra.mxu0 %v916
    %1415 = vmatprep.subr.mxu0 %v913
    %1416 = vmatpush2.msra.mxu0 %v912
    %1417 = vmatprep.subr.mxu0 %v909
    %1418 = vmatpush2.msra.mxu0 %v908
    %1419 = vmatprep.subr.mxu0 %v905
    %1420 = vmatpush2.msra.mxu0 %v904
    %1421 = vmatprep.subr.mxu0 %v901
    %1422 = vmatpush2.msra.mxu0 %v900
    %1423 = vmatprep.subr.mxu0 %v897
    %1424 = vmatpush2.msra.mxu0 %v896
    %1425 = vmatprep.subr.mxu0 %v893
    %1426 = vmatpush2.msra.mxu0 %v892
    %1427 = vmatprep.subr.mxu0 %v889
    %1428 = vmatpush2.msra.mxu0 %v888
    %1429 = vmatprep.subr.mxu0 %v885
    %1430 = vmatpush2.msra.mxu0 %v884
    %1431 = vmatprep.subr.mxu0 %v881
    %1432 = vmatpush2.msra.mxu0 %v880
    %1433 = vmatprep.subr.mxu0 %v877
    %1434 = vmatpush2.msra.mxu0 %v876
    %1435 = vmatprep.subr.mxu0 %v873
    %1436 = vmatpush2.msra.mxu0 %v872
    %1437 = vmatprep.subr.mxu0 %v869
    %1438 = vmatpush2.msra.mxu0 %v868
    %1439 = vmatprep.mubr.f32.mxu0 %v542
    %1440 = vmatmul.mubr.f32.gmra.mxu0 %v536
    %v1441 = vpop.f32.mrf.mxu0
    %v1442 = vadd.f32 %v1353, %v1441
    %v1443 = vpop.f32.mrf.mxu0
    %v1444 = vadd.f32 %v1355, %v1443
    %1445 = vmatprep.mubr.f32.mxu0 %v543
    %1446 = vmatmul.mubr.f32.gmra.mxu0 %v537
    %v1447 = vpop.f32.mrf.mxu0
    %v1448 = vadd.f32 %v1359, %v1447
    %v1449 = vpop.f32.mrf.mxu0
    %v1450 = vadd.f32 %v1361, %v1449
    %1451 = vmatprep.mubr.f32.mxu0 %v544
    %1452 = vmatmul.mubr.f32.gmra.mxu0 %v538
    %v1453 = vpop.f32.mrf.mxu0
    %v1454 = vadd.f32 %v1365, %v1453
    %v1455 = vpop.f32.mrf.mxu0
    %v1456 = vadd.f32 %v1367, %v1455
    %1457 = vmatprep.mubr.f32.mxu0 %v545
    %1458 = vmatmul.mubr.f32.gmra.mxu0 %v539
    %v1459 = vpop.f32.mrf.mxu0
    %v1460 = vadd.f32 %v1371, %v1459
    %v1461 = vpop.f32.mrf.mxu0
    %v1462 = vadd.f32 %v1373, %v1461
    %1463 = vdwg.mxu0
    %v1464 = vmax.f32 %v1175, %v1177
    %v1465 = vmax.f32 %v1181, %v1183
    %v1466 = vmax.f32 %v1187, %v1189
    %v1467 = vmax.f32 %v1193, %v1195
    %v1468 = vmax.f32 %v1442, %v1444
    %v1469 = vmax.f32 %v1448, %v1450
    %v1470 = vmax.f32 %v1454, %v1456
    %v1471 = vmax.f32 %v1460, %v1462
    %v1472 = vmax.f32 %v1464, %v1468
    %v1473 = vmax.f32 %v1465, %v1469
    %v1474 = vmax.f32 %v1466, %v1470
    %v1475 = vmax.f32 %v1467, %v1471
    %v1476 = vld [vmem:[%s6] sm:$0x1]
    %v1478 = vlaneseq
    %v1479 = vshrl.u32 %v1478, 7
    %v1480 = vsub.s32 0, %v1479
    %v1481 = vrot.slane %v1476, %v1480
    %v1483 = vadd.f32 %v1472, %v1481
    %v1484 = vadd.f32 %v1473, %v1481
    %v1485 = vadd.f32 %v1474, %v1481
    %v1486 = vadd.f32 %v1475, %v1481
    %v1487 = vmax.f32 %v1483, 0.0
    %v1488 = vmax.f32 %v1484, 0.0
    %v1489 = vmax.f32 %v1485, 0.0
    %v1490 = vmax.f32 %v1486, 0.0
    %v1491 = vld [vmem:[#allocation4] sm:$0xff]
    %v1492 = vld [vmem:[#allocation4 + $0x8] sm:$0xff]
    %v1493 = vld [vmem:[#allocation4 + $0x10] sm:$0xff]
    %v1494 = vld [vmem:[#allocation4 + $0x18] sm:$0xff]
    %v1495 = vld [vmem:[#allocation4 + $0x20] sm:$0xff]
    %v1496 = vld [vmem:[#allocation4 + $0x28] sm:$0xff]
    %v1497 = vld [vmem:[#allocation4 + $0x30] sm:$0xff]
    %v1498 = vld [vmem:[#allocation4 + $0x38] sm:$0xff]
    %v1499 = vld [vmem:[#allocation4 + $0x40] sm:$0xff]
    %v1500 = vld [vmem:[#allocation4 + $0x48] sm:$0xff]
    %v1501 = vld [vmem:[#allocation4 + $0x50] sm:$0xff]
    %v1502 = vld [vmem:[#allocation4 + $0x58] sm:$0xff]
    %v1503 = vld [vmem:[#allocation4 + $0x60] sm:$0xff]
    %v1504 = vld [vmem:[#allocation4 + $0x68] sm:$0xff]
    %v1505 = vld [vmem:[#allocation4 + $0x70] sm:$0xff]
    %v1506 = vld [vmem:[#allocation4 + $0x78] sm:$0xff]
    %v1507 = vld [vmem:[#allocation4 + $0x80] sm:$0xff]
    %v1508 = vld [vmem:[#allocation4 + $0x88] sm:$0xff]
    %v1509 = vld [vmem:[#allocation4 + $0x90] sm:$0xff]
    %v1510 = vld [vmem:[#allocation4 + $0x98] sm:$0xff]
    %v1511 = vld [vmem:[#allocation4 + $0xa0] sm:$0xff]
    %v1512 = vld [vmem:[#allocation4 + $0xa8] sm:$0xff]
    %v1513 = vld [vmem:[#allocation4 + $0xb0] sm:$0xff]
    %v1514 = vld [vmem:[#allocation4 + $0xb8] sm:$0xff]
    %v1515 = vld [vmem:[#allocation4 + $0xc0] sm:$0xff]
    %v1516 = vld [vmem:[#allocation4 + $0xc8] sm:$0xff]
    %v1517 = vld [vmem:[#allocation4 + $0xd0] sm:$0xff]
    %v1518 = vld [vmem:[#allocation4 + $0xd8] sm:$0xff]
    %v1519 = vld [vmem:[#allocation4 + $0xe0] sm:$0xff]
    %v1520 = vld [vmem:[#allocation4 + $0xe8] sm:$0xff]
    %v1521 = vld [vmem:[#allocation4 + $0xf0] sm:$0xff]
    %v1522 = vld [vmem:[#allocation4 + $0xf8] sm:$0xff]
    %v1523 = vld [vmem:[#allocation4 + $0x100] sm:$0xff]
    %v1524 = vld [vmem:[#allocation4 + $0x108] sm:$0xff]
    %v1525 = vld [vmem:[#allocation4 + $0x110] sm:$0xff]
    %v1526 = vld [vmem:[#allocation4 + $0x118] sm:$0xff]
    %v1527 = vld [vmem:[#allocation4 + $0x120] sm:$0xff]
    %v1528 = vld [vmem:[#allocation4 + $0x128] sm:$0xff]
    %v1529 = vld [vmem:[#allocation4 + $0x130] sm:$0xff]
    %v1530 = vld [vmem:[#allocation4 + $0x138] sm:$0xff]
    %v1531 = vld [vmem:[#allocation4 + $0x140] sm:$0xff]
    %v1532 = vld [vmem:[#allocation4 + $0x148] sm:$0xff]
    %v1533 = vld [vmem:[#allocation4 + $0x150] sm:$0xff]
    %v1534 = vld [vmem:[#allocation4 + $0x158] sm:$0xff]
    %v1535 = vld [vmem:[#allocation4 + $0x160] sm:$0xff]
    %v1536 = vld [vmem:[#allocation4 + $0x168] sm:$0xff]
    %v1537 = vld [vmem:[#allocation4 + $0x170] sm:$0xff]
    %v1538 = vld [vmem:[#allocation4 + $0x178] sm:$0xff]
    %v1539 = vld [vmem:[#allocation4 + $0x180] sm:$0xff]
    %v1540 = vld [vmem:[#allocation4 + $0x188] sm:$0xff]
    %v1541 = vld [vmem:[#allocation4 + $0x190] sm:$0xff]
    %v1542 = vld [vmem:[#allocation4 + $0x198] sm:$0xff]
    %v1543 = vld [vmem:[#allocation4 + $0x1a0] sm:$0xff]
    %v1544 = vld [vmem:[#allocation4 + $0x1a8] sm:$0xff]
    %v1545 = vld [vmem:[#allocation4 + $0x1b0] sm:$0xff]
    %v1546 = vld [vmem:[#allocation4 + $0x1b8] sm:$0xff]
    %v1547 = vld [vmem:[#allocation4 + $0x1c0] sm:$0xff]
    %v1548 = vld [vmem:[#allocation4 + $0x1c8] sm:$0xff]
    %v1549 = vld [vmem:[#allocation4 + $0x1d0] sm:$0xff]
    %v1550 = vld [vmem:[#allocation4 + $0x1d8] sm:$0xff]
    %v1551 = vld [vmem:[#allocation4 + $0x1e0] sm:$0xff]
    %v1552 = vld [vmem:[#allocation4 + $0x1e8] sm:$0xff]
    %v1553 = vld [vmem:[#allocation4 + $0x1f0] sm:$0xff]
    %v1554 = vld [vmem:[#allocation4 + $0x1f8] sm:$0xff]
    %v1555 = vld [vmem:[%s7] sm:$0x1]
    %v1557 = vlaneseq
    %v1558 = vshrl.u32 %v1557, 7
    %v1559 = vsub.s32 0, %v1558
    %v1560 = vrot.slane %v1555, %v1559
    %1562 = vmatprep.subr.mxu0 0.0
    %1563 = vmatpush1.msra.mxu0 %v1506
    %1564 = vmatprep.subr.mxu0 0.0
    %1565 = vmatpush1.msra.mxu0 %v1505
    %1566 = vmatprep.subr.mxu0 0.0
    %1567 = vmatpush1.msra.mxu0 %v1504
    %1568 = vmatprep.subr.mxu0 0.0
    %1569 = vmatpush1.msra.mxu0 %v1503
    %1570 = vmatprep.subr.mxu0 0.0
    %1571 = vmatpush1.msra.mxu0 %v1502
    %1572 = vmatprep.subr.mxu0 0.0
    %1573 = vmatpush1.msra.mxu0 %v1501
    %1574 = vmatprep.subr.mxu0 0.0
    %1575 = vmatpush1.msra.mxu0 %v1500
    %1576 = vmatprep.subr.mxu0 0.0
    %1577 = vmatpush1.msra.mxu0 %v1499
    %1578 = vmatprep.subr.mxu0 0.0
    %1579 = vmatpush1.msra.mxu0 %v1498
    %1580 = vmatprep.subr.mxu0 0.0
    %1581 = vmatpush1.msra.mxu0 %v1497
    %1582 = vmatprep.subr.mxu0 0.0
    %1583 = vmatpush1.msra.mxu0 %v1496
    %1584 = vmatprep.subr.mxu0 0.0
    %1585 = vmatpush1.msra.mxu0 %v1495
    %1586 = vmatprep.subr.mxu0 0.0
    %1587 = vmatpush1.msra.mxu0 %v1494
    %1588 = vmatprep.subr.mxu0 0.0
    %1589 = vmatpush1.msra.mxu0 %v1493
    %1590 = vmatprep.subr.mxu0 0.0
    %1591 = vmatpush1.msra.mxu0 %v1492
    %1592 = vmatprep.subr.mxu0 0.0
    %1593 = vmatpush1.msra.mxu0 %v1491
    %1594 = vmatprep.subr.mxu0 0.0
    %1595 = vmatpush2.msra.mxu0 %v1522
    %1596 = vmatprep.subr.mxu0 0.0
    %1597 = vmatpush2.msra.mxu0 %v1521
    %1598 = vmatprep.subr.mxu0 0.0
    %1599 = vmatpush2.msra.mxu0 %v1520
    %1600 = vmatprep.subr.mxu0 0.0
    %1601 = vmatpush2.msra.mxu0 %v1519
    %1602 = vmatprep.subr.mxu0 0.0
    %1603 = vmatpush2.msra.mxu0 %v1518
    %1604 = vmatprep.subr.mxu0 0.0
    %1605 = vmatpush2.msra.mxu0 %v1517
    %1606 = vmatprep.subr.mxu0 0.0
    %1607 = vmatpush2.msra.mxu0 %v1516
    %1608 = vmatprep.subr.mxu0 0.0
    %1609 = vmatpush2.msra.mxu0 %v1515
    %1610 = vmatprep.subr.mxu0 0.0
    %1611 = vmatpush2.msra.mxu0 %v1514
    %1612 = vmatprep.subr.mxu0 0.0
    %1613 = vmatpush2.msra.mxu0 %v1513
    %1614 = vmatprep.subr.mxu0 0.0
    %1615 = vmatpush2.msra.mxu0 %v1512
    %1616 = vmatprep.subr.mxu0 0.0
    %1617 = vmatpush2.msra.mxu0 %v1511
    %1618 = vmatprep.subr.mxu0 0.0
    %1619 = vmatpush2.msra.mxu0 %v1510
    %1620 = vmatprep.subr.mxu0 0.0
    %1621 = vmatpush2.msra.mxu0 %v1509
    %1622 = vmatprep.subr.mxu0 0.0
    %1623 = vmatpush2.msra.mxu0 %v1508
    %1624 = vmatprep.subr.mxu0 0.0
    %1625 = vmatpush2.msra.mxu0 %v1507
    %1626 = vmatprep.mubr.f32.mxu0 %v1488
    %1627 = vmatmul.mubr.f32.gmra.mxu0 %v1487
    %v1628 = vpop.f32.mrf.mxu0
    %v1629 = vadd.f32 %v1560, %v1628
    %v1630 = vpop.f32.mrf.mxu0
    %1631 = vdwg.mxu0
    %1632 = vmatprep.subr.mxu0 0.0
    %1633 = vmatpush1.msra.mxu0 %v1538
    %1634 = vmatprep.subr.mxu0 0.0
    %1635 = vmatpush1.msra.mxu0 %v1537
    %1636 = vmatprep.subr.mxu0 0.0
    %1637 = vmatpush1.msra.mxu0 %v1536
    %1638 = vmatprep.subr.mxu0 0.0
    %1639 = vmatpush1.msra.mxu0 %v1535
    %1640 = vmatprep.subr.mxu0 0.0
    %1641 = vmatpush1.msra.mxu0 %v1534
    %1642 = vmatprep.subr.mxu0 0.0
    %1643 = vmatpush1.msra.mxu0 %v1533
    %1644 = vmatprep.subr.mxu0 0.0
    %1645 = vmatpush1.msra.mxu0 %v1532
    %1646 = vmatprep.subr.mxu0 0.0
    %1647 = vmatpush1.msra.mxu0 %v1531
    %1648 = vmatprep.subr.mxu0 0.0
    %1649 = vmatpush1.msra.mxu0 %v1530
    %1650 = vmatprep.subr.mxu0 0.0
    %1651 = vmatpush1.msra.mxu0 %v1529
    %1652 = vmatprep.subr.mxu0 0.0
    %1653 = vmatpush1.msra.mxu0 %v1528
    %1654 = vmatprep.subr.mxu0 0.0
    %1655 = vmatpush1.msra.mxu0 %v1527
    %1656 = vmatprep.subr.mxu0 0.0
    %1657 = vmatpush1.msra.mxu0 %v1526
    %1658 = vmatprep.subr.mxu0 0.0
    %1659 = vmatpush1.msra.mxu0 %v1525
    %1660 = vmatprep.subr.mxu0 0.0
    %1661 = vmatpush1.msra.mxu0 %v1524
    %1662 = vmatprep.subr.mxu0 0.0
    %1663 = vmatpush1.msra.mxu0 %v1523
    %1664 = vmatprep.subr.mxu0 0.0
    %1665 = vmatpush2.msra.mxu0 %v1554
    %1666 = vmatprep.subr.mxu0 0.0
    %1667 = vmatpush2.msra.mxu0 %v1553
    %1668 = vmatprep.subr.mxu0 0.0
    %1669 = vmatpush2.msra.mxu0 %v1552
    %1670 = vmatprep.subr.mxu0 0.0
    %1671 = vmatpush2.msra.mxu0 %v1551
    %1672 = vmatprep.subr.mxu0 0.0
    %1673 = vmatpush2.msra.mxu0 %v1550
    %1674 = vmatprep.subr.mxu0 0.0
    %1675 = vmatpush2.msra.mxu0 %v1549
    %1676 = vmatprep.subr.mxu0 0.0
    %1677 = vmatpush2.msra.mxu0 %v1548
    %1678 = vmatprep.subr.mxu0 0.0
    %1679 = vmatpush2.msra.mxu0 %v1547
    %1680 = vmatprep.subr.mxu0 0.0
    %1681 = vmatpush2.msra.mxu0 %v1546
    %1682 = vmatprep.subr.mxu0 0.0
    %1683 = vmatpush2.msra.mxu0 %v1545
    %1684 = vmatprep.subr.mxu0 0.0
    %1685 = vmatpush2.msra.mxu0 %v1544
    %1686 = vmatprep.subr.mxu0 0.0
    %1687 = vmatpush2.msra.mxu0 %v1543
    %1688 = vmatprep.subr.mxu0 0.0
    %1689 = vmatpush2.msra.mxu0 %v1542
    %1690 = vmatprep.subr.mxu0 0.0
    %1691 = vmatpush2.msra.mxu0 %v1541
    %1692 = vmatprep.subr.mxu0 0.0
    %1693 = vmatpush2.msra.mxu0 %v1540
    %1694 = vmatprep.subr.mxu0 0.0
    %1695 = vmatpush2.msra.mxu0 %v1539
    %1696 = vmatprep.mubr.f32.mxu0 %v1490
    %1697 = vmatmul.mubr.f32.gmra.mxu0 %v1489
    %v1698 = vpop.f32.mrf.mxu0
    %v1699 = vadd.f32 %v1629, %v1698
    %v1700 = vpop.f32.mrf.mxu0
    %1701 = vdwg.mxu0
    %v1702 = vmax.f32 %v1699, 0.0
    %v1703 = vld [vmem:[%s4] sm:$0xff]
    %v1704 = vld [vmem:[%s4 + $0x8] sm:$0xff]
    %v1705 = vld [vmem:[%s4 + $0x10] sm:$0xff]
    %v1706 = vld [vmem:[%s4 + $0x18] sm:$0xff]
    %v1707 = vld [vmem:[%s4 + $0x20] sm:$0xff]
    %v1708 = vld [vmem:[%s4 + $0x28] sm:$0xff]
    %v1709 = vld [vmem:[%s4 + $0x30] sm:$0xff]
    %v1710 = vld [vmem:[%s4 + $0x38] sm:$0xff]
    %v1711 = vld [vmem:[%s4 + $0x40] sm:$0xff]
    %v1712 = vld [vmem:[%s4 + $0x48] sm:$0xff]
    %v1713 = vld [vmem:[%s4 + $0x50] sm:$0xff]
    %v1714 = vld [vmem:[%s4 + $0x58] sm:$0xff]
    %v1715 = vld [vmem:[%s4 + $0x60] sm:$0xff]
    %v1716 = vld [vmem:[%s4 + $0x68] sm:$0xff]
    %v1717 = vld [vmem:[%s4 + $0x70] sm:$0xff]
    %v1718 = vld [vmem:[%s4 + $0x78] sm:$0xff]
    %v1719 = vld [vmem:[%s8] sm:$0x1]
    %v1721 = vlaneseq
    %v1722 = vshrl.u32 %v1721, 7
    %v1723 = vsub.s32 0, %v1722
    %v1724 = vrot.slane %v1719, %v1723
    %1726 = vmatprep.subr.mxu0 0.0
    %1727 = vmatpush1.msra.mxu0 %v1718
    %1728 = vmatprep.subr.mxu0 0.0
    %1729 = vmatpush1.msra.mxu0 %v1717
    %1730 = vmatprep.subr.mxu0 0.0
    %1731 = vmatpush1.msra.mxu0 %v1716
    %1732 = vmatprep.subr.mxu0 0.0
    %1733 = vmatpush1.msra.mxu0 %v1715
    %1734 = vmatprep.subr.mxu0 0.0
    %1735 = vmatpush1.msra.mxu0 %v1714
    %1736 = vmatprep.subr.mxu0 0.0
    %1737 = vmatpush1.msra.mxu0 %v1713
    %1738 = vmatprep.subr.mxu0 0.0
    %1739 = vmatpush1.msra.mxu0 %v1712
    %1740 = vmatprep.subr.mxu0 0.0
    %1741 = vmatpush1.msra.mxu0 %v1711
    %1742 = vmatprep.subr.mxu0 0.0
    %1743 = vmatpush1.msra.mxu0 %v1710
    %1744 = vmatprep.subr.mxu0 0.0
    %1745 = vmatpush1.msra.mxu0 %v1709
    %1746 = vmatprep.subr.mxu0 0.0
    %1747 = vmatpush1.msra.mxu0 %v1708
    %1748 = vmatprep.subr.mxu0 0.0
    %1749 = vmatpush1.msra.mxu0 %v1707
    %1750 = vmatprep.subr.mxu0 0.0
    %1751 = vmatpush1.msra.mxu0 %v1706
    %1752 = vmatprep.subr.mxu0 0.0
    %1753 = vmatpush1.msra.mxu0 %v1705
    %1754 = vmatprep.subr.mxu0 0.0
    %1755 = vmatpush1.msra.mxu0 %v1704
    %1756 = vmatprep.subr.mxu0 0.0
    %1757 = vmatpush1.msra.mxu0 %v1703
    %1758 = vmatprep.subr.mxu0 0.0
    %1759 = vmatpush2.msra.mxu0 0.0
    %1760 = vmatprep.subr.mxu0 0.0
    %1761 = vmatpush2.msra.mxu0 0.0
    %1762 = vmatprep.subr.mxu0 0.0
    %1763 = vmatpush2.msra.mxu0 0.0
    %1764 = vmatprep.subr.mxu0 0.0
    %1765 = vmatpush2.msra.mxu0 0.0
    %1766 = vmatprep.subr.mxu0 0.0
    %1767 = vmatpush2.msra.mxu0 0.0
    %1768 = vmatprep.subr.mxu0 0.0
    %1769 = vmatpush2.msra.mxu0 0.0
    %1770 = vmatprep.subr.mxu0 0.0
    %1771 = vmatpush2.msra.mxu0 0.0
    %1772 = vmatprep.subr.mxu0 0.0
    %1773 = vmatpush2.msra.mxu0 0.0
    %1774 = vmatprep.subr.mxu0 0.0
    %1775 = vmatpush2.msra.mxu0 0.0
    %1776 = vmatprep.subr.mxu0 0.0
    %1777 = vmatpush2.msra.mxu0 0.0
    %1778 = vmatprep.subr.mxu0 0.0
    %1779 = vmatpush2.msra.mxu0 0.0
    %1780 = vmatprep.subr.mxu0 0.0
    %1781 = vmatpush2.msra.mxu0 0.0
    %1782 = vmatprep.subr.mxu0 0.0
    %1783 = vmatpush2.msra.mxu0 0.0
    %1784 = vmatprep.subr.mxu0 0.0
    %1785 = vmatpush2.msra.mxu0 0.0
    %1786 = vmatprep.subr.mxu0 0.0
    %1787 = vmatpush2.msra.mxu0 0.0
    %1788 = vmatprep.subr.mxu0 0.0
    %1789 = vmatpush2.msra.mxu0 0.0
    %1790 = vmatprep.mubr.f32.mxu0 0.0
    %1791 = vmatmul.mubr.f32.gmra.mxu0 %v1702
    %v1792 = vpop.f32.mrf.mxu0
    %v1793 = vadd.f32 %v1724, %v1792
    %v1794 = vpop.f32.mrf.mxu0
    %1795 = vdwg.mxu0
    %1796 = vmax.xlane.f32.xlu0 %v1793
    %v1797 = vpop.xlane.xlu0 %1796
    %v1798 = vsub.f32 %v1793, %v1797
    %v1799 = vmul.f32 %v1798, 1.442695
    %v1800 = vpow.pop %v1799
    %1801 = vadd.xlane.f32.xlu0 %v1800
    %v1802 = vpop.xlane.xlu0 %1801
    %v1803 = vlog2.pop %v1802
    %v1804 = vmul.f32 %v1803, 0.6931472
    %v1805 = vsub.f32 %v1798, %v1804
    %1806 = vst [vmem:[%s9] sm:$0xff] %v1805
    // Predicated region
    $region46: #{testnet_forward.1} parent=1 // pred_check
      _
    $region47: #{testnet_forward.1} parent=1 // pred_check_branch
      %1808 = sbr.rel (0) target = $region49
    $region48: #{testnet_forward.1} parent=1 // pred_region
      _
    $region49: #{testnet_forward.1} parent=1 // pred_fallthru
      _
    // Predicated region
    $region50: #{testnet_forward.1} parent=1 // pred_check
      _
    $region51: #{testnet_forward.1} parent=1 // pred_check_branch
      %1810 = sbr.rel (0) target = $region53
    $region52: #{testnet_forward.1} parent=1 // pred_region
      _
    $region53: #{testnet_forward.1} parent=1 // pred_fallthru
      _
    %1811 = vsyncpa [#allocation3], 1
    %1812 = vsyncpa [#allocation5], 1

</llo_original>
